<compile_context>
chip_gen: v7x
topology: tpu7x:2x2x1
jax: 0.10.0
libtpu: 0.0.40
codegen_flags: <defaults>
</compile_context>

<pallas_src>
import functools

import jax
import jax.numpy as jnp
import numpy as np
from jax.experimental import pallas as pl
from jax.experimental.pallas import tpu as pltpu


# ----------------------------------------------------------------------------
# kernels
# ----------------------------------------------------------------------------
def _conv1_kernel(xp_ref, w_ref, yp_ref, st_ref):
    # xp_ref: (nb, H+2, W*Cin)   zero H-padded input tile (f32)
    # w_ref : (3, W*Cin, W*Cout) banded per-dy conv1 weights (bf16)
    # yp_ref: (nb, H+2, W*Cout)  pre-BN conv1 output, H-padded halo = 0 (bf16)
    # st_ref: (1, 2, W*Cout)     per-tile [sum, sum-of-squares] of conv1 output
    nb, Hp, WCi = xp_ref.shape
    H = Hp - 2
    WCo = w_ref.shape[2]
    M = nb * H

    def tap(dy):  # 3 row taps; the dx taps + W padding are folded into w_ref
        slab = xp_ref[:, dy:dy + H, :].reshape(M, WCi).astype(jnp.bfloat16)
        return jnp.dot(slab, w_ref[dy], preferred_element_type=jnp.float32)

    acc = tap(0) + tap(1) + tap(2)                       # (M, WCo) f32

    # fused single-pass BN1 moments (finalized to mean/var in the wrapper)
    st_ref[:, 0:1, :] = jnp.sum(acc, axis=0, keepdims=True).reshape(1, 1, WCo)
    st_ref[:, 1:2, :] = jnp.sum(acc * acc, axis=0, keepdims=True).reshape(1, 1, WCo)

    # store the pre-BN activation with a zero 1-row H halo; only the halo rows
    # are zero-filled (no full-tensor zero pass), interior is one bf16 store.
    zrow = jnp.zeros((nb, 1, WCo), yp_ref.dtype)
    yp_ref[:, 0:1, :] = zrow
    yp_ref[:, Hp - 1:Hp, :] = zrow
    yp_ref[:, 1:Hp - 1, :] = acc.reshape(nb, H, WCo).astype(yp_ref.dtype)


def _bn1_relu_conv2_kernel(yp_ref, w_ref, sc_ref, sh_ref, z_ref, st_ref):
    # yp_ref: (nb, H+2, W*C)  pre-BN conv1 output (H-padded, bf16)
    # w_ref : (3, W*C, W*C)   banded per-dy conv2 weights (bf16)
    # sc/sh : (1, W*C)        per-lane BN1 affine: gamma*rsqrt(var), beta-mean*scale
    # z_ref : (nb, H, W*C)    pre-BN conv2 output (bf16)
    # st_ref: (1, 2, W*C)     per-tile [sum, sum-of-squares] of conv2 output
    nb, Hp, WC = yp_ref.shape
    H = Hp - 2
    M = nb * H

    # BN1 + ReLU on the padded tile, then re-zero the halo rows (conv2's zero
    # padding applies *after* bn+relu).
    a = jnp.maximum(yp_ref[...].astype(jnp.float32) * sc_ref[...] + sh_ref[...], 0.0)
    hrow = jax.lax.broadcasted_iota(jnp.int32, a.shape, 1)
    a = jnp.where((hrow >= 1) & (hrow <= H), a, 0.0).astype(jnp.bfloat16)

    def tap(dy):
        slab = a[:, dy:dy + H, :].reshape(M, WC)
        return jnp.dot(slab, w_ref[dy], preferred_element_type=jnp.float32)

    acc = tap(0) + tap(1) + tap(2)                       # (M, WC) f32

    st_ref[:, 0:1, :] = jnp.sum(acc, axis=0, keepdims=True).reshape(1, 1, WC)
    st_ref[:, 1:2, :] = jnp.sum(acc * acc, axis=0, keepdims=True).reshape(1, 1, WC)
    z_ref[...] = acc.reshape(nb, H, WC).astype(z_ref.dtype)


def _bn2_add_relu_kernel(z_ref, x_ref, sc_ref, sh_ref, o_ref):
    # BN2 (precomputed per-lane affine) + identity residual + ReLU (pointwise).
    z = z_ref[...].astype(jnp.float32) * sc_ref[...] + sh_ref[...]
    o = jnp.maximum(z + x_ref[...].astype(jnp.float32), 0.0)
    o_ref[...] = o.astype(o_ref.dtype)


# ----------------------------------------------------------------------------
# host-side helpers (layout plumbing + tiny BN finalization, plain JAX)
# ----------------------------------------------------------------------------
def _banded_conv_weights(w_oihw, W):
    """Fold the 3 dx taps + zero W-padding of a 3x3 conv into 3 banded
    (W*Cin, W*Cout) matrices (one per row tap dy) for the (.., W*C) layout."""
    cout, cin = w_oihw.shape[0], w_oihw.shape[1]
    # T[dx, w_in, w_out] = 1 iff w_in == w_out + dx - 1 and in range
    t = np.zeros((3, W, W), np.float32)
    for dx in range(3):
        for wo in range(W):
            wi = wo + dx - 1
            if 0 <= wi < W:
                t[dx, wi, wo] = 1.0
    t = jnp.asarray(t)
    b = jnp.einsum("oidx,xuv->duivo", w_oihw.astype(jnp.float32), t)
    return b.reshape(3, W * cin, W * cout)


def _finalize_bn(st_tiles, gamma, beta, W, C, count, eps=1e-5):
    """Per-tile [sum, sumsq] over lanes -> per-lane BN affine (scale, shift)."""
    s = jnp.sum(st_tiles, axis=0)                  # (2, W*C)
    s = s.reshape(2, W, C).sum(axis=1)             # (2, C) fold W into channel
    mean = s[0] / count
    var = s[1] / count - mean * mean               # biased (training-mode) var
    inv = gamma * jax.lax.rsqrt(var + eps)
    scale = jnp.tile(inv, W).reshape(1, W * C)             # lane = w*C + c
    shift = jnp.tile(beta - mean * inv, W).reshape(1, W * C)
    return scale.astype(jnp.float32), shift.astype(jnp.float32)


@functools.partial(jax.jit, static_argnames=("block_n",))
def resblock_forward(x_nchw, w1, w2, g1, b1, g2, b2, *, block_n=1):
    """ResBlock forward. x_nchw: (N, C, H, W); w*: torch (Cout, Cin, 3, 3)."""
    N, Cin, H, W = x_nchw.shape
    Cout = w1.shape[0]
    # identity residual path: downsample=None, stride=1, Cin == Cout
    assert Cin == Cout and N % block_n == 0
    WCi, WCo = W * Cin, W * Cout
    nblk = N // block_n
    grid = (nblk,)

    # layout plumbing: NCHW -> (N, H, W*C) lane-dense slab; zero-pad H by 1.
    x_l = jnp.transpose(x_nchw, (0, 2, 3, 1)).reshape(N, H, WCi)
    xp = jnp.pad(x_l, ((0, 0), (1, 1), (0, 0)))

    bw1 = _banded_conv_weights(w1, W).astype(jnp.bfloat16)   # (3, WCi, WCo)
    bw2 = _banded_conv_weights(w2, W).astype(jnp.bfloat16)   # (3, WCo, WCo)

    cparams = pltpu.CompilerParams(
        dimension_semantics=("parallel",),         # shards over v7x's 2 TCs
        vmem_limit_bytes=32 * 1024 * 1024)         # explicit, safe on all gens

    full3 = lambda i: (0, 0, 0)
    vec2 = lambda i: (0, 0)
    tile3 = lambda i: (i, 0, 0)

    # ---- kernel A: conv1 (+ fused BN1 moments) -------------------------------
    y1p, st1 = pl.pallas_call(
        _conv1_kernel,
        out_shape=(jax.ShapeDtypeStruct((N, H + 2, WCo), jnp.bfloat16),
                   jax.ShapeDtypeStruct((nblk, 2, WCo), jnp.float32)),
        grid_spec=pltpu.PrefetchScalarGridSpec(
            num_scalar_prefetch=0, grid=grid,
            in_specs=[pl.BlockSpec((block_n, H + 2, WCi), tile3),
                      pl.BlockSpec((3, WCi, WCo), full3)],
            out_specs=(pl.BlockSpec((block_n, H + 2, WCo), tile3),
                       pl.BlockSpec((1, 2, WCo), tile3))),
        compiler_params=cparams,
    )(xp, bw1)

    sc1, sh1 = _finalize_bn(st1, g1, b1, W, Cout, N * H * W)

    # ---- kernel B: BN1 + ReLU + conv2 (+ fused BN2 moments) -------------------
    z, st2 = pl.pallas_call(
        _bn1_relu_conv2_kernel,
        out_shape=(jax.ShapeDtypeStruct((N, H, WCo), jnp.bfloat16),
                   jax.ShapeDtypeStruct((nblk, 2, WCo), jnp.float32)),
        grid_spec=pltpu.PrefetchScalarGridSpec(
            num_scalar_prefetch=0, grid=grid,
            in_specs=[pl.BlockSpec((block_n, H + 2, WCo), tile3),
                      pl.BlockSpec((3, WCo, WCo), full3),
                      pl.BlockSpec((1, WCo), vec2),
                      pl.BlockSpec((1, WCo), vec2)],
            out_specs=(pl.BlockSpec((block_n, H, WCo), tile3),
                       pl.BlockSpec((1, 2, WCo), tile3))),
        compiler_params=cparams,
    )(y1p, bw2, sc1, sh1)

    sc2, sh2 = _finalize_bn(st2, g2, b2, W, Cout, N * H * W)

    # ---- kernel C: BN2 + identity residual + ReLU -----------------------------
    out_l = pl.pallas_call(
        _bn2_add_relu_kernel,
        out_shape=jax.ShapeDtypeStruct((N, H, WCo), x_nchw.dtype),
        grid_spec=pltpu.PrefetchScalarGridSpec(
            num_scalar_prefetch=0, grid=grid,
            in_specs=[pl.BlockSpec((block_n, H, WCo), tile3),
                      pl.BlockSpec((block_n, H, WCi), tile3),
                      pl.BlockSpec((1, WCo), vec2),
                      pl.BlockSpec((1, WCo), vec2)],
            out_specs=pl.BlockSpec((block_n, H, WCo), tile3)),
        compiler_params=cparams,
    )(z, x_l, sc2, sh2)

    # (N, H, W*C) -> NCHW
    return out_l.reshape(N, H, W, Cout).transpose(0, 3, 1, 2)


# ----------------------------------------------------------------------------
# pure-JAX reference mirroring the PyTorch module (train-mode BN)
# ----------------------------------------------------------------------------
def _reference(x, w1, w2, g1, b1, g2, b2):
    def conv(inp, w):
        return jax.lax.conv_general_dilated(
            inp, w, window_strides=(1, 1), padding=((1, 1), (1, 1)),
            dimension_numbers=("NCHW", "OIHW", "NCHW"))

    def bn(inp, g, b):
        mean = jnp.mean(inp, axis=(0, 2, 3), keepdims=True)
        var = jnp.mean((inp - mean) ** 2, axis=(0, 2, 3), keepdims=True)
        return ((inp - mean) / jnp.sqrt(var + 1e-5)) * g.reshape(1, -1, 1, 1) \
            + b.reshape(1, -1, 1, 1)

    y = jax.nn.relu(bn(conv(x, w1), g1, b1))
    z = bn(conv(y, w2), g2, b2)
    return jax.nn.relu(z + x)


if __name__ == "__main__":
    key = jax.random.PRNGKey(0)
    kx, k1, k2 = jax.random.split(key, 3)

    N, C, H, W = 2, 4, 16, 16          # in_channels == out_channels, stride=1
    fan_in = C * 3 * 3

    x = jax.random.normal(kx, (N, C, H, W), jnp.float32)
    w1 = jax.random.normal(k1, (C, C, 3, 3), jnp.float32) / jnp.sqrt(fan_in)
    w2 = jax.random.normal(k2, (C, C, 3, 3), jnp.float32) / jnp.sqrt(fan_in)
    g1 = jnp.ones((C,), jnp.float32)   # torch BatchNorm2d default init
    b1 = jnp.zeros((C,), jnp.float32)
    g2 = jnp.ones((C,), jnp.float32)
    b2 = jnp.zeros((C,), jnp.float32)
    # TODO(synk): `downsample` is None in the default ResBlock config; a
    # non-identity downsample (stride != 1 or Cin != Cout) would need its own
    # kernel on the residual path.

    out = jax.block_until_ready(resblock_forward(x, w1, w2, g1, b1, g2, b2))
    ref = _reference(x, w1, w2, g1, b1, g2, b2)

    # bf16 MXU operands / bf16 intermediates vs an all-f32 XLA reference.
    np.testing.assert_allclose(np.asarray(out), np.asarray(ref),
                               rtol=2e-2, atol=3e-2)

    print("KERNEL_OK")
</pallas_src>

<mosaic_0001>
module attributes {stable_mosaic.version = 11 : i64} {
  func.func @_conv1_kernel(%arg0: i32, %arg1: memref<1x18x64xf32, #tpu.memory_space<vmem>>, %arg2: memref<3x64x64xbf16, #tpu.memory_space<vmem>>, %arg3: memref<1x18x64xbf16, #tpu.memory_space<vmem>>, %arg4: memref<1x2x64xf32, #tpu.memory_space<vmem>>) attributes {dimension_semantics = [#tpu.dimension_semantics<parallel>], iteration_bounds = array<i64: 2>, scalar_prefetch = 0 : i64, scratch_operands = 0 : i64, tpu.core_type = #tpu.core_type<tc>, window_params = [{transform_indices = @transform_0, window_bounds = array<i64: 1, 18, 64>}, {pipeline_mode = #tpu.pipeline_mode<synchronous>, transform_indices = @transform_1, window_bounds = array<i64: 3, 64, 64>}, {transform_indices = @transform_2, window_bounds = array<i64: 1, 18, 64>}, {transform_indices = @transform_3, window_bounds = array<i64: 1, 2, 64>}]} {
    %c0 = arith.constant 0 : index
    %c0_0 = arith.constant 0 : index
    %c0_1 = arith.constant 0 : index
    %0 = vector.load %arg1[%c0, %c0_0, %c0_1] : memref<1x18x64xf32, #tpu.memory_space<vmem>>, vector<1x16x64xf32>
    %1 = vector.shape_cast %0 : vector<1x16x64xf32> to vector<16x64xf32>
    %2 = arith.truncf %1 : vector<16x64xf32> to vector<16x64xbf16>
    %c0_2 = arith.constant 0 : index
    %c0_3 = arith.constant 0 : index
    %c0_4 = arith.constant 0 : index
    %3 = vector.load %arg2[%c0_2, %c0_3, %c0_4] : memref<3x64x64xbf16, #tpu.memory_space<vmem>>, vector<1x64x64xbf16>
    %4 = vector.shape_cast %3 : vector<1x64x64xbf16> to vector<64x64xbf16>
    %cst = arith.constant dense<0.000000e+00> : vector<16x64xf32>
    %5 = tpu.matmul %2, %4, %cst {dimension_numbers = #tpu.dot_dimension_numbers<[1], [0], [0], [1], [0, 0, 1, 1], [], []>} : vector<16x64xbf16>, vector<64x64xbf16>, vector<16x64xf32> -> vector<16x64xf32>
    %c0_5 = arith.constant 0 : index
    %c1 = arith.constant 1 : index
    %c0_6 = arith.constant 0 : index
    %6 = vector.load %arg1[%c0_5, %c1, %c0_6] : memref<1x18x64xf32, #tpu.memory_space<vmem>>, vector<1x16x64xf32>
    %7 = vector.shape_cast %6 : vector<1x16x64xf32> to vector<16x64xf32>
    %8 = arith.truncf %7 : vector<16x64xf32> to vector<16x64xbf16>
    %c1_7 = arith.constant 1 : index
    %c0_8 = arith.constant 0 : index
    %c0_9 = arith.constant 0 : index
    %9 = vector.load %arg2[%c1_7, %c0_8, %c0_9] : memref<3x64x64xbf16, #tpu.memory_space<vmem>>, vector<1x64x64xbf16>
    %10 = vector.shape_cast %9 : vector<1x64x64xbf16> to vector<64x64xbf16>
    %cst_10 = arith.constant dense<0.000000e+00> : vector<16x64xf32>
    %11 = tpu.matmul %8, %10, %cst_10 {dimension_numbers = #tpu.dot_dimension_numbers<[1], [0], [0], [1], [0, 0, 1, 1], [], []>} : vector<16x64xbf16>, vector<64x64xbf16>, vector<16x64xf32> -> vector<16x64xf32>
    %12 = arith.addf %5, %11 : vector<16x64xf32>
    %c0_11 = arith.constant 0 : index
    %c2 = arith.constant 2 : index
    %c0_12 = arith.constant 0 : index
    %13 = vector.load %arg1[%c0_11, %c2, %c0_12] : memref<1x18x64xf32, #tpu.memory_space<vmem>>, vector<1x16x64xf32>
    %14 = vector.shape_cast %13 : vector<1x16x64xf32> to vector<16x64xf32>
    %15 = arith.truncf %14 : vector<16x64xf32> to vector<16x64xbf16>
    %c2_13 = arith.constant 2 : index
    %c0_14 = arith.constant 0 : index
    %c0_15 = arith.constant 0 : index
    %16 = vector.load %arg2[%c2_13, %c0_14, %c0_15] : memref<3x64x64xbf16, #tpu.memory_space<vmem>>, vector<1x64x64xbf16>
    %17 = vector.shape_cast %16 : vector<1x64x64xbf16> to vector<64x64xbf16>
    %cst_16 = arith.constant dense<0.000000e+00> : vector<16x64xf32>
    %18 = tpu.matmul %15, %17, %cst_16 {dimension_numbers = #tpu.dot_dimension_numbers<[1], [0], [0], [1], [0, 0, 1, 1], [], []>} : vector<16x64xbf16>, vector<64x64xbf16>, vector<16x64xf32> -> vector<16x64xf32>
    %19 = arith.addf %12, %18 : vector<16x64xf32>
    %cst_17 = arith.constant dense<0.000000e+00> : vector<64xf32>
    %20 = vector.multi_reduction <add>, %19, %cst_17 [0] : vector<16x64xf32> to vector<64xf32>
    %21 = vector.shape_cast %20 : vector<64xf32> to vector<1x64xf32>
    %22 = vector.shape_cast %21 : vector<1x64xf32> to vector<1x1x64xf32>
    %c0_18 = arith.constant 0 : index
    %c0_19 = arith.constant 0 : index
    %c0_20 = arith.constant 0 : index
    %23 = vector.load %arg4[%c0_18, %c0_19, %c0_20] : memref<1x2x64xf32, #tpu.memory_space<vmem>>, vector<1x1x64xf32>
    tpu.vector_store %arg4[%c0_18, %c0_19, %c0_20], %22 {strides = array<i32>} : memref<1x2x64xf32, #tpu.memory_space<vmem>>, vector<1x1x64xf32>,
    %24 = arith.mulf %19, %19 : vector<16x64xf32>
    %cst_21 = arith.constant dense<0.000000e+00> : vector<64xf32>
    %25 = vector.multi_reduction <add>, %24, %cst_21 [0] : vector<16x64xf32> to vector<64xf32>
    %26 = vector.shape_cast %25 : vector<64xf32> to vector<1x64xf32>
    %27 = vector.shape_cast %26 : vector<1x64xf32> to vector<1x1x64xf32>
    %c0_22 = arith.constant 0 : index
    %c1_23 = arith.constant 1 : index
    %c0_24 = arith.constant 0 : index
    %28 = vector.load %arg4[%c0_22, %c1_23, %c0_24] : memref<1x2x64xf32, #tpu.memory_space<vmem>>, vector<1x1x64xf32>
    tpu.vector_store %arg4[%c0_22, %c1_23, %c0_24], %27 {strides = array<i32>} : memref<1x2x64xf32, #tpu.memory_space<vmem>>, vector<1x1x64xf32>,
    %cst_25 = arith.constant 0.000000e+00 : bf16
    %29 = vector.broadcast %cst_25 : bf16 to vector<1x1x64xbf16>
    %c0_26 = arith.constant 0 : index
    %c0_27 = arith.constant 0 : index
    %c0_28 = arith.constant 0 : index
    %30 = vector.load %arg3[%c0_26, %c0_27, %c0_28] : memref<1x18x64xbf16, #tpu.memory_space<vmem>>, vector<1x1x64xbf16>
    tpu.vector_store %arg3[%c0_26, %c0_27, %c0_28], %29 {strides = array<i32>} : memref<1x18x64xbf16, #tpu.memory_space<vmem>>, vector<1x1x64xbf16>,
    %c0_29 = arith.constant 0 : index
    %c17 = arith.constant 17 : index
    %c0_30 = arith.constant 0 : index
    %31 = vector.load %arg3[%c0_29, %c17, %c0_30] : memref<1x18x64xbf16, #tpu.memory_space<vmem>>, vector<1x1x64xbf16>
    tpu.vector_store %arg3[%c0_29, %c17, %c0_30], %29 {strides = array<i32>} : memref<1x18x64xbf16, #tpu.memory_space<vmem>>, vector<1x1x64xbf16>,
    %32 = vector.shape_cast %19 : vector<16x64xf32> to vector<1x16x64xf32>
    %33 = arith.truncf %32 : vector<1x16x64xf32> to vector<1x16x64xbf16>
    %c0_31 = arith.constant 0 : index
    %c1_32 = arith.constant 1 : index
    %c0_33 = arith.constant 0 : index
    %34 = vector.load %arg3[%c0_31, %c1_32, %c0_33] : memref<1x18x64xbf16, #tpu.memory_space<vmem>>, vector<1x16x64xbf16>
    tpu.vector_store %arg3[%c0_31, %c1_32, %c0_33], %33 {strides = array<i32>} : memref<1x18x64xbf16, #tpu.memory_space<vmem>>, vector<1x16x64xbf16>,
    return
  }
  func.func @transform_0(%arg0: i32) -> (i32, i32, i32) {
    %c0_i32 = arith.constant 0 : i32
    %c0_i32_0 = arith.constant 0 : i32
    %c0_i32_1 = arith.constant 0 : i32
    return %arg0, %c0_i32, %c0_i32_0 : i32, i32, i32
  }
  func.func @transform_1(%arg0: i32) -> (i32, i32, i32) {
    %c0_i32 = arith.constant 0 : i32
    %c0_i32_0 = arith.constant 0 : i32
    %c0_i32_1 = arith.constant 0 : i32
    %c0_i32_2 = arith.constant 0 : i32
    return %c0_i32, %c0_i32_0, %c0_i32_1 : i32, i32, i32
  }
  func.func @transform_2(%arg0: i32) -> (i32, i32, i32) {
    %c0_i32 = arith.constant 0 : i32
    %c0_i32_0 = arith.constant 0 : i32
    %c0_i32_1 = arith.constant 0 : i32
    return %arg0, %c0_i32, %c0_i32_0 : i32, i32, i32
  }
  func.func @transform_3(%arg0: i32) -> (i32, i32, i32) {
    %c0_i32 = arith.constant 0 : i32
    %c0_i32_0 = arith.constant 0 : i32
    %c0_i32_1 = arith.constant 0 : i32
    return %arg0, %c0_i32, %c0_i32_0 : i32, i32, i32
  }
}

module attributes {stable_mosaic.version = 11 : i64} {
  func.func @_bn1_relu_conv2_kernel(%arg0: i32, %arg1: memref<1x18x64xbf16, #tpu.memory_space<vmem>>, %arg2: memref<3x64x64xbf16, #tpu.memory_space<vmem>>, %arg3: memref<1x64xf32, #tpu.memory_space<vmem>>, %arg4: memref<1x64xf32, #tpu.memory_space<vmem>>, %arg5: memref<1x16x64xbf16, #tpu.memory_space<vmem>>, %arg6: memref<1x2x64xf32, #tpu.memory_space<vmem>>) attributes {dimension_semantics = [#tpu.dimension_semantics<parallel>], iteration_bounds = array<i64: 2>, scalar_prefetch = 0 : i64, scratch_operands = 0 : i64, tpu.core_type = #tpu.core_type<tc>, window_params = [{transform_indices = @transform_0, window_bounds = array<i64: 1, 18, 64>}, {pipeline_mode = #tpu.pipeline_mode<synchronous>, transform_indices = @transform_1, window_bounds = array<i64: 3, 64, 64>}, {pipeline_mode = #tpu.pipeline_mode<synchronous>, transform_indices = @transform_2, window_bounds = array<i64: 1, 64>}, {pipeline_mode = #tpu.pipeline_mode<synchronous>, transform_indices = @transform_3, window_bounds = array<i64: 1, 64>}, {transform_indices = @transform_4, window_bounds = array<i64: 1, 16, 64>}, {transform_indices = @transform_5, window_bounds = array<i64: 1, 2, 64>}]} {
    %c0 = arith.constant 0 : index
    %c0_0 = arith.constant 0 : index
    %c0_1 = arith.constant 0 : index
    %0 = vector.load %arg1[%c0, %c0_0, %c0_1] : memref<1x18x64xbf16, #tpu.memory_space<vmem>>, vector<1x18x64xbf16>
    %1 = arith.extf %0 : vector<1x18x64xbf16> to vector<1x18x64xf32>
    %c0_2 = arith.constant 0 : index
    %c0_3 = arith.constant 0 : index
    %2 = vector.load %arg3[%c0_2, %c0_3] : memref<1x64xf32, #tpu.memory_space<vmem>>, vector<1x64xf32>
    %3 = vector.shape_cast %2 : vector<1x64xf32> to vector<1x1x64xf32>
    %4 = vector.broadcast %3 : vector<1x1x64xf32> to vector<1x18x64xf32>
    %5 = arith.mulf %1, %4 : vector<1x18x64xf32>
    %c0_4 = arith.constant 0 : index
    %c0_5 = arith.constant 0 : index
    %6 = vector.load %arg4[%c0_4, %c0_5] : memref<1x64xf32, #tpu.memory_space<vmem>>, vector<1x64xf32>
    %7 = vector.shape_cast %6 : vector<1x64xf32> to vector<1x1x64xf32>
    %8 = vector.broadcast %7 : vector<1x1x64xf32> to vector<1x18x64xf32>
    %9 = arith.addf %5, %8 : vector<1x18x64xf32>
    %cst = arith.constant 0.000000e+00 : f32
    %10 = vector.broadcast %cst : f32 to vector<1x18x64xf32>
    %11 = arith.maximumf %9, %10 : vector<1x18x64xf32>
    %12 = tpu.iota {dimensions = array<i32: 1>} : vector<1x18x64xi32>
    %c1_i32 = arith.constant 1 : i32
    %13 = vector.broadcast %c1_i32 : i32 to vector<1x18x64xi32>
    %14 = arith.cmpi sge, %12, %13 : vector<1x18x64xi32>
    %c16_i32 = arith.constant 16 : i32
    %15 = vector.broadcast %c16_i32 : i32 to vector<1x18x64xi32>
    %16 = arith.cmpi sle, %12, %15 : vector<1x18x64xi32>
    %17 = arith.andi %14, %16 : vector<1x18x64xi1>
    %cst_6 = arith.constant 0.000000e+00 : f32
    %18 = vector.broadcast %cst_6 : f32 to vector<1x18x64xf32>
    %19 = arith.select %17, %11, %18 : vector<1x18x64xi1>, vector<1x18x64xf32>
    %20 = arith.truncf %19 : vector<1x18x64xf32> to vector<1x18x64xbf16>
    %21 = vector.extract_strided_slice %20 {offsets = [0, 0, 0], sizes = [1, 16, 64], strides = [1, 1, 1]} : vector<1x18x64xbf16> to vector<1x16x64xbf16>
    %22 = vector.shape_cast %21 : vector<1x16x64xbf16> to vector<16x64xbf16>
    %c0_7 = arith.constant 0 : index
    %c0_8 = arith.constant 0 : index
    %c0_9 = arith.constant 0 : index
    %23 = vector.load %arg2[%c0_7, %c0_8, %c0_9] : memref<3x64x64xbf16, #tpu.memory_space<vmem>>, vector<1x64x64xbf16>
    %24 = vector.shape_cast %23 : vector<1x64x64xbf16> to vector<64x64xbf16>
    %cst_10 = arith.constant dense<0.000000e+00> : vector<16x64xf32>
    %25 = tpu.matmul %22, %24, %cst_10 {dimension_numbers = #tpu.dot_dimension_numbers<[1], [0], [0], [1], [0, 0, 1, 1], [], []>} : vector<16x64xbf16>, vector<64x64xbf16>, vector<16x64xf32> -> vector<16x64xf32>
    %26 = vector.extract_strided_slice %20 {offsets = [0, 1, 0], sizes = [1, 16, 64], strides = [1, 1, 1]} : vector<1x18x64xbf16> to vector<1x16x64xbf16>
    %27 = vector.shape_cast %26 : vector<1x16x64xbf16> to vector<16x64xbf16>
    %c1 = arith.constant 1 : index
    %c0_11 = arith.constant 0 : index
    %c0_12 = arith.constant 0 : index
    %28 = vector.load %arg2[%c1, %c0_11, %c0_12] : memref<3x64x64xbf16, #tpu.memory_space<vmem>>, vector<1x64x64xbf16>
    %29 = vector.shape_cast %28 : vector<1x64x64xbf16> to vector<64x64xbf16>
    %cst_13 = arith.constant dense<0.000000e+00> : vector<16x64xf32>
    %30 = tpu.matmul %27, %29, %cst_13 {dimension_numbers = #tpu.dot_dimension_numbers<[1], [0], [0], [1], [0, 0, 1, 1], [], []>} : vector<16x64xbf16>, vector<64x64xbf16>, vector<16x64xf32> -> vector<16x64xf32>
    %31 = arith.addf %25, %30 : vector<16x64xf32>
    %32 = vector.extract_strided_slice %20 {offsets = [0, 2, 0], sizes = [1, 16, 64], strides = [1, 1, 1]} : vector<1x18x64xbf16> to vector<1x16x64xbf16>
    %33 = vector.shape_cast %32 : vector<1x16x64xbf16> to vector<16x64xbf16>
    %c2 = arith.constant 2 : index
    %c0_14 = arith.constant 0 : index
    %c0_15 = arith.constant 0 : index
    %34 = vector.load %arg2[%c2, %c0_14, %c0_15] : memref<3x64x64xbf16, #tpu.memory_space<vmem>>, vector<1x64x64xbf16>
    %35 = vector.shape_cast %34 : vector<1x64x64xbf16> to vector<64x64xbf16>
    %cst_16 = arith.constant dense<0.000000e+00> : vector<16x64xf32>
    %36 = tpu.matmul %33, %35, %cst_16 {dimension_numbers = #tpu.dot_dimension_numbers<[1], [0], [0], [1], [0, 0, 1, 1], [], []>} : vector<16x64xbf16>, vector<64x64xbf16>, vector<16x64xf32> -> vector<16x64xf32>
    %37 = arith.addf %31, %36 : vector<16x64xf32>
    %cst_17 = arith.constant dense<0.000000e+00> : vector<64xf32>
    %38 = vector.multi_reduction <add>, %37, %cst_17 [0] : vector<16x64xf32> to vector<64xf32>
    %39 = vector.shape_cast %38 : vector<64xf32> to vector<1x64xf32>
    %40 = vector.shape_cast %39 : vector<1x64xf32> to vector<1x1x64xf32>
    %c0_18 = arith.constant 0 : index
    %c0_19 = arith.constant 0 : index
    %c0_20 = arith.constant 0 : index
    %41 = vector.load %arg6[%c0_18, %c0_19, %c0_20] : memref<1x2x64xf32, #tpu.memory_space<vmem>>, vector<1x1x64xf32>
    tpu.vector_store %arg6[%c0_18, %c0_19, %c0_20], %40 {strides = array<i32>} : memref<1x2x64xf32, #tpu.memory_space<vmem>>, vector<1x1x64xf32>,
    %42 = arith.mulf %37, %37 : vector<16x64xf32>
    %cst_21 = arith.constant dense<0.000000e+00> : vector<64xf32>
    %43 = vector.multi_reduction <add>, %42, %cst_21 [0] : vector<16x64xf32> to vector<64xf32>
    %44 = vector.shape_cast %43 : vector<64xf32> to vector<1x64xf32>
    %45 = vector.shape_cast %44 : vector<1x64xf32> to vector<1x1x64xf32>
    %c0_22 = arith.constant 0 : index
    %c1_23 = arith.constant 1 : index
    %c0_24 = arith.constant 0 : index
    %46 = vector.load %arg6[%c0_22, %c1_23, %c0_24] : memref<1x2x64xf32, #tpu.memory_space<vmem>>, vector<1x1x64xf32>
    tpu.vector_store %arg6[%c0_22, %c1_23, %c0_24], %45 {strides = array<i32>} : memref<1x2x64xf32, #tpu.memory_space<vmem>>, vector<1x1x64xf32>,
    %47 = vector.shape_cast %37 : vector<16x64xf32> to vector<1x16x64xf32>
    %48 = arith.truncf %47 : vector<1x16x64xf32> to vector<1x16x64xbf16>
    %c0_25 = arith.constant 0 : index
    %c0_26 = arith.constant 0 : index
    %c0_27 = arith.constant 0 : index
    %49 = vector.load %arg5[%c0_25, %c0_26, %c0_27] : memref<1x16x64xbf16, #tpu.memory_space<vmem>>, vector<1x16x64xbf16>
    tpu.vector_store %arg5[%c0_25, %c0_26, %c0_27], %48 {strides = array<i32>} : memref<1x16x64xbf16, #tpu.memory_space<vmem>>, vector<1x16x64xbf16>,
    return
  }
  func.func @transform_0(%arg0: i32) -> (i32, i32, i32) {
    %c0_i32 = arith.constant 0 : i32
    %c0_i32_0 = arith.constant 0 : i32
    %c0_i32_1 = arith.constant 0 : i32
    return %arg0, %c0_i32, %c0_i32_0 : i32, i32, i32
  }
  func.func @transform_1(%arg0: i32) -> (i32, i32, i32) {
    %c0_i32 = arith.constant 0 : i32
    %c0_i32_0 = arith.constant 0 : i32
    %c0_i32_1 = arith.constant 0 : i32
    %c0_i32_2 = arith.constant 0 : i32
    return %c0_i32, %c0_i32_0, %c0_i32_1 : i32, i32, i32
  }
  func.func @transform_2(%arg0: i32) -> (i32, i32) {
    %c0_i32 = arith.constant 0 : i32
    %c0_i32_0 = arith.constant 0 : i32
    %c0_i32_1 = arith.constant 0 : i32
    return %c0_i32, %c0_i32_0 : i32, i32
  }
  func.func @transform_3(%arg0: i32) -> (i32, i32) {
    %c0_i32 = arith.constant 0 : i32
    %c0_i32_0 = arith.constant 0 : i32
    %c0_i32_1 = arith.constant 0 : i32
    return %c0_i32, %c0_i32_0 : i32, i32
  }
  func.func @transform_4(%arg0: i32) -> (i32, i32, i32) {
    %c0_i32 = arith.constant 0 : i32
    %c0_i32_0 = arith.constant 0 : i32
    %c0_i32_1 = arith.constant 0 : i32
    return %arg0, %c0_i32, %c0_i32_0 : i32, i32, i32
  }
  func.func @transform_5(%arg0: i32) -> (i32, i32, i32) {
    %c0_i32 = arith.constant 0 : i32
    %c0_i32_0 = arith.constant 0 : i32
    %c0_i32_1 = arith.constant 0 : i32
    return %arg0, %c0_i32, %c0_i32_0 : i32, i32, i32
  }
}

module attributes {stable_mosaic.version = 11 : i64} {
  func.func @_bn2_add_relu_kernel(%arg0: i32, %arg1: memref<1x16x64xbf16, #tpu.memory_space<vmem>>, %arg2: memref<1x16x64xf32, #tpu.memory_space<vmem>>, %arg3: memref<1x64xf32, #tpu.memory_space<vmem>>, %arg4: memref<1x64xf32, #tpu.memory_space<vmem>>, %arg5: memref<1x16x64xf32, #tpu.memory_space<vmem>>) attributes {dimension_semantics = [#tpu.dimension_semantics<parallel>], iteration_bounds = array<i64: 2>, scalar_prefetch = 0 : i64, scratch_operands = 0 : i64, tpu.core_type = #tpu.core_type<tc>, window_params = [{transform_indices = @transform_0, window_bounds = array<i64: 1, 16, 64>}, {transform_indices = @transform_1, window_bounds = array<i64: 1, 16, 64>}, {pipeline_mode = #tpu.pipeline_mode<synchronous>, transform_indices = @transform_2, window_bounds = array<i64: 1, 64>}, {pipeline_mode = #tpu.pipeline_mode<synchronous>, transform_indices = @transform_3, window_bounds = array<i64: 1, 64>}, {transform_indices = @transform_4, window_bounds = array<i64: 1, 16, 64>}]} {
    %c0 = arith.constant 0 : index
    %c0_0 = arith.constant 0 : index
    %c0_1 = arith.constant 0 : index
    %0 = vector.load %arg1[%c0, %c0_0, %c0_1] : memref<1x16x64xbf16, #tpu.memory_space<vmem>>, vector<1x16x64xbf16>
    %1 = arith.extf %0 : vector<1x16x64xbf16> to vector<1x16x64xf32>
    %c0_2 = arith.constant 0 : index
    %c0_3 = arith.constant 0 : index
    %2 = vector.load %arg3[%c0_2, %c0_3] : memref<1x64xf32, #tpu.memory_space<vmem>>, vector<1x64xf32>
    %3 = vector.shape_cast %2 : vector<1x64xf32> to vector<1x1x64xf32>
    %4 = vector.broadcast %3 : vector<1x1x64xf32> to vector<1x16x64xf32>
    %5 = arith.mulf %1, %4 : vector<1x16x64xf32>
    %c0_4 = arith.constant 0 : index
    %c0_5 = arith.constant 0 : index
    %6 = vector.load %arg4[%c0_4, %c0_5] : memref<1x64xf32, #tpu.memory_space<vmem>>, vector<1x64xf32>
    %7 = vector.shape_cast %6 : vector<1x64xf32> to vector<1x1x64xf32>
    %8 = vector.broadcast %7 : vector<1x1x64xf32> to vector<1x16x64xf32>
    %9 = arith.addf %5, %8 : vector<1x16x64xf32>
    %c0_6 = arith.constant 0 : index
    %c0_7 = arith.constant 0 : index
    %c0_8 = arith.constant 0 : index
    %10 = vector.load %arg2[%c0_6, %c0_7, %c0_8] : memref<1x16x64xf32, #tpu.memory_space<vmem>>, vector<1x16x64xf32>
    %11 = arith.addf %9, %10 : vector<1x16x64xf32>
    %cst = arith.constant 0.000000e+00 : f32
    %12 = vector.broadcast %cst : f32 to vector<1x16x64xf32>
    %13 = arith.maximumf %11, %12 : vector<1x16x64xf32>
    %c0_9 = arith.constant 0 : index
    %c0_10 = arith.constant 0 : index
    %c0_11 = arith.constant 0 : index
    %14 = vector.load %arg5[%c0_9, %c0_10, %c0_11] : memref<1x16x64xf32, #tpu.memory_space<vmem>>, vector<1x16x64xf32>
    tpu.vector_store %arg5[%c0_9, %c0_10, %c0_11], %13 {strides = array<i32>} : memref<1x16x64xf32, #tpu.memory_space<vmem>>, vector<1x16x64xf32>,
    return
  }
  func.func @transform_0(%arg0: i32) -> (i32, i32, i32) {
    %c0_i32 = arith.constant 0 : i32
    %c0_i32_0 = arith.constant 0 : i32
    %c0_i32_1 = arith.constant 0 : i32
    return %arg0, %c0_i32, %c0_i32_0 : i32, i32, i32
  }
  func.func @transform_1(%arg0: i32) -> (i32, i32, i32) {
    %c0_i32 = arith.constant 0 : i32
    %c0_i32_0 = arith.constant 0 : i32
    %c0_i32_1 = arith.constant 0 : i32
    return %arg0, %c0_i32, %c0_i32_0 : i32, i32, i32
  }
  func.func @transform_2(%arg0: i32) -> (i32, i32) {
    %c0_i32 = arith.constant 0 : i32
    %c0_i32_0 = arith.constant 0 : i32
    %c0_i32_1 = arith.constant 0 : i32
    return %c0_i32, %c0_i32_0 : i32, i32
  }
  func.func @transform_3(%arg0: i32) -> (i32, i32) {
    %c0_i32 = arith.constant 0 : i32
    %c0_i32_0 = arith.constant 0 : i32
    %c0_i32_1 = arith.constant 0 : i32
    return %c0_i32, %c0_i32_0 : i32, i32
  }
  func.func @transform_4(%arg0: i32) -> (i32, i32, i32) {
    %c0_i32 = arith.constant 0 : i32
    %c0_i32_0 = arith.constant 0 : i32
    %c0_i32_1 = arith.constant 0 : i32
    return %arg0, %c0_i32, %c0_i32_0 : i32, i32, i32
  }
}

</mosaic_0001>

<llo_original>
// kernel: tile.23
$region0: #{tile.23}
  #allocation0 [shape = 's32[1]{0}', space=sflag, size = 0x4, scoped, tag = 'scoped memory for tile.23']
  %s0 = inlined_call_operand.vmem [shape: f32[4], index: 0, kind: input, shape index: {}]
  %s1 = inlined_call_operand.vmem [shape: f32[16,4], index: 1, kind: output, shape index: {}]
  // Predicated region
  $region2: #{tile.23} parent=0 // pred_check
    _
  $region3: #{tile.23} parent=0 // pred_check_branch
    %3 = sbr.rel (0) target = $region5
  $region4: #{tile.23} parent=0 // pred_region
    _
  $region5: #{tile.23} parent=0 // pred_fallthru
    _
  %v4 = vld [vmem:[%s0] ss:$0 sm:$0xff]
  %5 = vst [vmem:[%s1] sm:$0xff] %v4
  %s6 = scalar_lea.vmem %s1, 8
  %7 = vst [vmem:[%s6] sm:$0xff] %v4

// kernel: tile.24
$region0: #{tile.24}
  %s0 = inlined_call_operand.vmem [shape: f32[16,4], index: 0, kind: input, shape index: {}]
  %s1 = inlined_call_operand.vmem [shape: f32[1,64], index: 1, kind: output, shape index: {}]
  $region1: #{tile.24} parent=0
    #allocation0 [shape = 'u8[4096]{0}', space=vmem, size = 0x1000, scoped, tag = 'scoped mem for output reshape']
    %v2 = vld [vmem:[%s0] sm:$0x1]
    %vm3 = vcmask 31744
    %4 = vst.msk [vmem:[#allocation0] sm:$0x1] %vm3, %v2
    %s5 = scalar_lea.vmem %s0, 15
    %v6 = vld [vmem:[%s5] sm:$0x1]
    %7 = vrot.lane.b32.xlu0 %v6, 60
    %v8 = vpop.permute.xlu0 %7
    %vm9 = vcmask 523744
    %10 = vst.msk [vmem:[#allocation0] sm:$0x1] %vm9, %v8
    %s11 = scalar_lea.vmem %s0, 14
    %v12 = vld [vmem:[%s11] sm:$0x1]
    %13 = vrot.lane.b32.xlu0 %v12, 56
    %v14 = vpop.permute.xlu0 %13
    %vm15 = vcmask 490944
    %16 = vst.msk [vmem:[#allocation0] sm:$0x1] %vm15, %v14
    %s17 = scalar_lea.vmem %s0, 13
    %v18 = vld [vmem:[%s17] sm:$0x1]
    %19 = vrot.lane.b32.xlu0 %v18, 52
    %v20 = vpop.permute.xlu0 %19
    %vm21 = vcmask 458144
    %22 = vst.msk [vmem:[#allocation0] sm:$0x1] %vm21, %v20
    %s23 = scalar_lea.vmem %s0, 12
    %v24 = vld [vmem:[%s23] sm:$0x1]
    %25 = vrot.lane.b32.xlu0 %v24, 48
    %v26 = vpop.permute.xlu0 %25
    %vm27 = vcmask 425344
    %28 = vst.msk [vmem:[#allocation0] sm:$0x1] %vm27, %v26
    %s29 = scalar_lea.vmem %s0, 11
    %v30 = vld [vmem:[%s29] sm:$0x1]
    %31 = vrot.lane.b32.xlu0 %v30, 44
    %v32 = vpop.permute.xlu0 %31
    %vm33 = vcmask 392544
    %34 = vst.msk [vmem:[#allocation0] sm:$0x1] %vm33, %v32
    %s35 = scalar_lea.vmem %s0, 10
    %v36 = vld [vmem:[%s35] sm:$0x1]
    %37 = vrot.lane.b32.xlu0 %v36, 40
    %v38 = vpop.permute.xlu0 %37
    %vm39 = vcmask 359744
    %40 = vst.msk [vmem:[#allocation0] sm:$0x1] %vm39, %v38
    %s41 = scalar_lea.vmem %s0, 9
    %v42 = vld [vmem:[%s41] sm:$0x1]
    %43 = vrot.lane.b32.xlu0 %v42, 36
    %v44 = vpop.permute.xlu0 %43
    %vm45 = vcmask 326944
    %46 = vst.msk [vmem:[#allocation0] sm:$0x1] %vm45, %v44
    %s47 = scalar_lea.vmem %s0, 8
    %v48 = vld [vmem:[%s47] sm:$0x1]
    %49 = vrot.lane.b32.xlu0 %v48, 32
    %v50 = vpop.permute.xlu0 %49
    %vm51 = vcmask 294144
    %52 = vst.msk [vmem:[#allocation0] sm:$0x1] %vm51, %v50
    %s53 = scalar_lea.vmem %s0, 7
    %v54 = vld [vmem:[%s53] sm:$0x1]
    %55 = vrot.lane.b32.xlu0 %v54, 28
    %v56 = vpop.permute.xlu0 %55
    %vm57 = vcmask 261344
    %58 = vst.msk [vmem:[#allocation0] sm:$0x1] %vm57, %v56
    %s59 = scalar_lea.vmem %s0, 6
    %v60 = vld [vmem:[%s59] sm:$0x1]
    %61 = vrot.lane.b32.xlu0 %v60, 24
    %v62 = vpop.permute.xlu0 %61
    %vm63 = vcmask 228544
    %64 = vst.msk [vmem:[#allocation0] sm:$0x1] %vm63, %v62
    %s65 = scalar_lea.vmem %s0, 5
    %v66 = vld [vmem:[%s65] sm:$0x1]
    %67 = vrot.lane.b32.xlu0 %v66, 20
    %v68 = vpop.permute.xlu0 %67
    %vm69 = vcmask 195744
    %70 = vst.msk [vmem:[#allocation0] sm:$0x1] %vm69, %v68
    %s71 = scalar_lea.vmem %s0, 4
    %v72 = vld [vmem:[%s71] sm:$0x1]
    %73 = vrot.lane.b32.xlu0 %v72, 16
    %v74 = vpop.permute.xlu0 %73
    %vm75 = vcmask 162944
    %76 = vst.msk [vmem:[#allocation0] sm:$0x1] %vm75, %v74
    %s77 = scalar_lea.vmem %s0, 3
    %v78 = vld [vmem:[%s77] sm:$0x1]
    %79 = vrot.lane.b32.xlu0 %v78, 12
    %v80 = vpop.permute.xlu0 %79
    %vm81 = vcmask 130144
    %82 = vst.msk [vmem:[#allocation0] sm:$0x1] %vm81, %v80
    %s83 = scalar_lea.vmem %s0, 2
    %v84 = vld [vmem:[%s83] sm:$0x1]
    %85 = vrot.lane.b32.xlu0 %v84, 8
    %v86 = vpop.permute.xlu0 %85
    %vm87 = vcmask 97344
    %88 = vst.msk [vmem:[#allocation0] sm:$0x1] %vm87, %v86
    %s89 = scalar_lea.vmem %s0, 1
    %v90 = vld [vmem:[%s89] sm:$0x1]
    %91 = vrot.lane.b32.xlu0 %v90, 4
    %v92 = vpop.permute.xlu0 %91
    %vm93 = vcmask 64544
    %94 = vst.msk [vmem:[#allocation0] sm:$0x1] %vm93, %v92
    %s96 = sshllo.u32 0, 1
    %v98 = vld [vmem:[#allocation0] sm:%s96]
    %s99 = sshllo.u32 0, 1
    %100 = vst [vmem:[%s1] sm:%s99] %v98

// kernel: resblock_forward.3
$region0: #{resblock_forward.3}
  #allocation0 [shape = 'u32[]', space=smem, size = 0x4, offset = 0x4, fixed_abs, tag = 'smem constant byte address 0x4 - core index']
  #allocation1 [shape = 'u32[144,128]{1,0:T(1,128)}', space=vmem, size = 0x12000, scoped, tag = 'internal scratch']
  %s0 = inlined_call_operand.vmem [shape: f32[2,18,64], index: 0, kind: input, shape index: {}]
  %s1 = inlined_call_operand.vmem [shape: bf16[3,64,64], index: 1, kind: input, shape index: {}]
  %s2 = inlined_call_operand.vmem [shape: bf16[2,18,64], index: 2, kind: output, shape index: {0}]
  %s3 = inlined_call_operand.vmem [shape: f32[2,2,64], index: 3, kind: output, shape index: {1}]
  %4 = xla_tuple %s2, %s3
  %s5 = sld [smem:[#allocation0]]
  $region49: #{resblock_forward.3} parent=0
    _
  %s7 = ssub.s32 1, %s5
  %s8 = scalar_select 0, %s7, %s5
  loop: start=0, step=1, limit=4
  $region2: #{resblock_forward.3} parent=0 // loop_pre_header
    _
  $region3: #{resblock_forward.3} parent=0 // loop_header
    %s10 = sphi 0, %s14
    %p11 = scmp.ge.s32.totalorder %s10, 4
    %s20 = sphi 0, %s22
    %s23 = sphi 0, %s20
    %s24 = sphi 0, %s23
    %s40 = sphi 0, %s24
    %s44 = sphi 0, %s44
    %s46 = sphi 0, %s44
    %s47 = sphi 0, %s46
    %s61 = sphi 0, %s47
    %s67 = sphi 0, %s69
    %s70 = sphi 0, %s67
    %s71 = sphi 0, %s70
    %s87 = sphi 0, %s71
    %s93 = sphi 0, %s95
    %s96 = sphi 0, %s93
    %s97 = sphi 0, %s96
    %s113 = sphi 0, %s97
  $region4: #{resblock_forward.3} parent=0 // loop_header_branch
    %13 = sbr.rel (%p11) target = $region8
  $region5: #{resblock_forward.3} parent=0 // loop_body
    %s15 = ssub.s32 %s10, 1
    %s16 = ssub.s32 %s10, 2
    %s17 = sadd.s32 %s10, 1
    %s18 = ssub.s32 %s10, %s17
    %p19 = scmp.eq.s32.totalorder %s18, 0
    %s21 = sadd.s32 %s20, 1
    %s22 = scalar_select %p19, %s20, %s21
    %p25 = pneg %p19
    %p26 = scmp.eq.s32.totalorder %s10, 1
    %p27 = por %p25, %p26
    %p28 = scmp.ne.s32.totalorder %s20, %s23
    %p29 = scmp.eq.s32.totalorder %s10, 0
    %p30 = por %p28, %p29
    %p31 = scmp.ne.s32.totalorder %s20, %s23
    %p32 = scmp.eq.s32.totalorder %s15, 1
    %p33 = por %p31, %p32
    %p34 = scmp.ne.s32.totalorder %s23, %s24
    %p35 = scmp.eq.s32.totalorder %s15, 0
    %p36 = por %p34, %p35
    %p37 = scmp.ne.s32.totalorder %s23, %s24
    %p38 = scmp.eq.s32.totalorder %s16, 1
    %p39 = por %p37, %p38
    %p41 = scmp.ne.s32.totalorder %s24, %s40
    %p42 = scmp.eq.s32.totalorder %s16, 0
    %p43 = por %p41, %p42
    %s45 = sadd.s32 %s44, 1
    %p48 = scmp.eq.s32.totalorder %s10, 1
    %p49 = scmp.ne.s32.totalorder %s44, %s46
    %p50 = scmp.eq.s32.totalorder %s10, 0
    %p51 = por %p49, %p50
    %p52 = scmp.ne.s32.totalorder %s44, %s46
    %p53 = scmp.eq.s32.totalorder %s15, 1
    %p54 = por %p52, %p53
    %p55 = scmp.ne.s32.totalorder %s46, %s47
    %p56 = scmp.eq.s32.totalorder %s15, 0
    %p57 = por %p55, %p56
    %p58 = scmp.ne.s32.totalorder %s46, %s47
    %p59 = scmp.eq.s32.totalorder %s16, 1
    %p60 = por %p58, %p59
    %p62 = scmp.ne.s32.totalorder %s47, %s61
    %p63 = scmp.eq.s32.totalorder %s16, 0
    %p64 = por %p62, %p63
    %s65 = ssub.s32 %s10, %s17
    %p66 = scmp.eq.s32.totalorder %s65, 0
    %s68 = sadd.s32 %s67, 1
    %s69 = scalar_select %p66, %s67, %s68
    %p72 = pneg %p66
    %p73 = scmp.eq.s32.totalorder %s10, 1
    %p74 = por %p72, %p73
    %p75 = scmp.ne.s32.totalorder %s67, %s70
    %p76 = scmp.eq.s32.totalorder %s10, 0
    %p77 = por %p75, %p76
    %p78 = scmp.ne.s32.totalorder %s67, %s70
    %p79 = scmp.eq.s32.totalorder %s15, 1
    %p80 = por %p78, %p79
    %p81 = scmp.ne.s32.totalorder %s70, %s71
    %p82 = scmp.eq.s32.totalorder %s15, 0
    %p83 = por %p81, %p82
    %p84 = scmp.ne.s32.totalorder %s70, %s71
    %p85 = scmp.eq.s32.totalorder %s16, 1
    %p86 = por %p84, %p85
    %p88 = scmp.ne.s32.totalorder %s71, %s87
    %p89 = scmp.eq.s32.totalorder %s16, 0
    %p90 = por %p88, %p89
    %s91 = ssub.s32 %s10, %s17
    %p92 = scmp.eq.s32.totalorder %s91, 0
    %s94 = sadd.s32 %s93, 1
    %s95 = scalar_select %p92, %s93, %s94
    %p98 = pneg %p92
    %p99 = scmp.eq.s32.totalorder %s10, 1
    %p100 = por %p98, %p99
    %p101 = scmp.ne.s32.totalorder %s93, %s96
    %p102 = scmp.eq.s32.totalorder %s10, 0
    %p103 = por %p101, %p102
    %p104 = scmp.ne.s32.totalorder %s93, %s96
    %p105 = scmp.eq.s32.totalorder %s15, 1
    %p106 = por %p104, %p105
    %p107 = scmp.ne.s32.totalorder %s96, %s97
    %p108 = scmp.eq.s32.totalorder %s15, 0
    %p109 = por %p107, %p108
    %p110 = scmp.ne.s32.totalorder %s96, %s97
    %p111 = scmp.eq.s32.totalorder %s16, 1
    %p112 = por %p110, %p111
    %p114 = scmp.ne.s32.totalorder %s97, %s113
    %p115 = scmp.eq.s32.totalorder %s16, 0
    %p116 = por %p114, %p115
    %p117 = scmp.le.s32.totalorder 1, %s10
    %p118 = scmp.lt.s32.totalorder %s10, 3
    %p119 = pnand %p117, %p118
    %p120 = pneg %p119
    // Predicated region
    $region9: #{resblock_forward.3} parent=5 // pred_check
      _
    $region10: #{resblock_forward.3} parent=5 // pred_check_branch
      %122 = sbr.rel (%p119) target = $region12
    $region11: #{resblock_forward.3} parent=5 // pred_region
      %s123 = ssub.s32 %s10, 1
      // Predicated region
      $region13: #{resblock_forward.3} parent=11 // pred_check
        %p124 = pneg %p57
      $region14: #{resblock_forward.3} parent=11 // pred_check_branch
        %126 = sbr.rel (%p124) target = $region16
      $region15: #{resblock_forward.3} parent=11 // pred_region
        _
      $region16: #{resblock_forward.3} parent=11 // pred_fallthru
        _
    $region12: #{resblock_forward.3} parent=5 // pred_fallthru
      _
    %p127 = scmp.lt.s32.totalorder %s10, 2
    // Predicated region
    $region17: #{resblock_forward.3} parent=5 // pred_check
      %p128 = pneg %p127
    $region18: #{resblock_forward.3} parent=5 // pred_check_branch
      %130 = sbr.rel (%p128) target = $region20
    $region19: #{resblock_forward.3} parent=5 // pred_region
      // Predicated region
      $region21: #{resblock_forward.3} parent=19 // pred_check
        %p131 = pneg %p30
      $region22: #{resblock_forward.3} parent=19 // pred_check_branch
        %133 = sbr.rel (%p131) target = $region24
      $region23: #{resblock_forward.3} parent=19 // pred_region
        %p134 = scmp.lt.s32.totalorder %s10, 1
        %s135 = scalar_select %p134, %s10, 1
        %s136 = smul.addr %s135, 3
        %s137 = smul.addr %s136, 8
        %s138 = scalar_lea.vmem %s0, %s137
      $region24: #{resblock_forward.3} parent=19 // pred_fallthru
        _
    $region20: #{resblock_forward.3} parent=5 // pred_fallthru
      _
    %p139 = scmp.le.s32.totalorder 1, %s10
    %p140 = scmp.lt.s32.totalorder %s10, 3
    %p141 = pnand %p139, %p140
    %p142 = pneg %p141
    // Predicated region
    $region25: #{resblock_forward.3} parent=5 // pred_check
      _
    $region26: #{resblock_forward.3} parent=5 // pred_check_branch
      %144 = sbr.rel (%p141) target = $region28
    $region27: #{resblock_forward.3} parent=5 // pred_region
      %s145 = ssub.s32 %s10, 1
      %p146 = scmp.lt.s32.totalorder %s15, 1
      %s147 = scalar_select %p146, %s15, 1
      %s148 = smul.addr %s147, 3
      %s149 = smul.addr %s148, 8
      %s150 = scalar_lea.vmem %s0, %s149
      %p151 = pneg %p36
      %p152 = pneg %p33
      %p153 = pneg %p57
      %p154 = pneg %p54
      %p155 = pneg %p83
      %p156 = pneg %p80
      %p157 = scmp.lt.s32.totalorder %s15, 1
      %s158 = scalar_select %p157, %s15, 1
      %s159 = smul.addr %s158, 3
      %s160 = smul.addr %s159, 4
      %s161 = scalar_lea.vmem %s2, %s160
      %p162 = pneg %p109
      %p163 = pneg %p106
      %p164 = scmp.lt.s32.totalorder %s15, 1
      %s165 = scalar_select %p164, %s15, 1
      %s166 = smul.addr %s165, 2
      %s167 = scalar_lea.vmem %s3, %s166
      %p168 = scmp.lt.s32.totalorder %s15, 1
      %s169 = scalar_select %p168, %s15, 1
      %s170 = smul.addr %s169, 3
      %s171 = smul.addr %s170, 8
      %s172 = scalar_lea.vmem %s0, %s171
      %p173 = scmp.lt.s32.totalorder %s15, 1
      %s174 = scalar_select %p173, %s15, 1
      %s175 = smul.addr %s174, 3
      %s176 = smul.addr %s175, 4
      %s177 = scalar_lea.vmem %s2, %s176
      %p178 = scmp.lt.s32.totalorder %s15, 1
      %s179 = scalar_select %p178, %s15, 1
      %s180 = smul.addr %s179, 2
      %s181 = scalar_lea.vmem %s3, %s180
      %v183 = vld [vmem:[%s172] sm:$0xff]
      %v184 = vld [vmem:[%s172 + $0x8] sm:$0xff]
      %v185 = vpack.c.bf16 %v184, %v183
      %v186 = vld [vmem:[%s1] sm:$0xf]
      %v187 = vld [vmem:[%s1 + $0x4] sm:$0xf]
      %v188 = vld [vmem:[%s1 + $0x8] sm:$0xf]
      %v189 = vld [vmem:[%s1 + $0xc] sm:$0xf]
      %v190 = vld [vmem:[%s1 + $0x10] sm:$0xf]
      %v191 = vld [vmem:[%s1 + $0x14] sm:$0xf]
      %v192 = vld [vmem:[%s1 + $0x18] sm:$0xf]
      %v193 = vld [vmem:[%s1 + $0x1c] sm:$0xf]
      %v194 = vld [vmem:[%s172 + $0x1] sm:$0xff]
      %v195 = vld [vmem:[%s172 + $0x9] sm:$0xff]
      %v196 = vpack.c.bf16 %v195, %v194
      %s197 = scalar_lea.vmem %s1, 32
      %v198 = vld [vmem:[%s197] sm:$0xf]
      %v199 = vld [vmem:[%s197 + $0x4] sm:$0xf]
      %v200 = vld [vmem:[%s197 + $0x8] sm:$0xf]
      %v201 = vld [vmem:[%s197 + $0xc] sm:$0xf]
      %v202 = vld [vmem:[%s197 + $0x10] sm:$0xf]
      %v203 = vld [vmem:[%s197 + $0x14] sm:$0xf]
      %v204 = vld [vmem:[%s197 + $0x18] sm:$0xf]
      %v205 = vld [vmem:[%s197 + $0x1c] sm:$0xf]
      %v214 = vunpack.c.l.b16 %v198
      %v215 = vunpack.c.l.b16 %v199
      %v216 = vunpack.c.l.b16 %v200
      %v217 = vunpack.c.l.b16 %v201
      %v218 = vunpack.c.l.b16 %v202
      %v219 = vunpack.c.l.b16 %v203
      %v220 = vunpack.c.l.b16 %v204
      %v221 = vunpack.c.l.b16 %v205
      %v222 = vpack.c.b16 %v215, %v214
      %v223 = vpack.c.b16 %v217, %v216
      %v224 = vpack.c.b16 %v219, %v218
      %v225 = vpack.c.b16 %v221, %v220
      %vm230 = vcmask 523264
      %v232 = vsel %vm230, %v196, 0
      %234 = vmatprep.subr.bf16.mxu0 0
      %235 = vmatpush1.bf16.msra.mxu0 %v222
      %236 = vmatprep.subr.bf16.mxu0 0
      %237 = vmatpush1.bf16.msra.mxu0 %v223
      %238 = vmatprep.subr.bf16.mxu0 0
      %239 = vmatpush1.bf16.msra.mxu0 %v224
      %240 = vmatprep.subr.bf16.mxu0 0
      %241 = vmatpush1.bf16.msra.mxu0 %v225
      %242 = vmatprep.subr.bf16.mxu0 0
      %243 = vmatpush1.bf16.msra.mxu0 0
      %244 = vmatprep.subr.bf16.mxu0 0
      %245 = vmatpush1.bf16.msra.mxu0 0
      %246 = vmatprep.subr.bf16.mxu0 0
      %247 = vmatpush1.bf16.msra.mxu0 0
      %248 = vmatprep.subr.bf16.mxu0 0
      %249 = vmatpush1.bf16.msra.mxu0 0
      %250 = vmatprep.subr.bf16.mxu0 0
      %251 = vmatpush1.bf16.msra.mxu0 0
      %252 = vmatprep.subr.bf16.mxu0 0
      %253 = vmatpush1.bf16.msra.mxu0 0
      %254 = vmatprep.subr.bf16.mxu0 0
      %255 = vmatpush1.bf16.msra.mxu0 0
      %256 = vmatprep.subr.bf16.mxu0 0
      %257 = vmatpush1.bf16.msra.mxu0 0
      %258 = vmatprep.subr.bf16.mxu0 0
      %259 = vmatpush1.bf16.msra.mxu0 0
      %260 = vmatprep.subr.bf16.mxu0 0
      %261 = vmatpush1.bf16.msra.mxu0 0
      %262 = vmatprep.subr.bf16.mxu0 0
      %263 = vmatpush1.bf16.msra.mxu0 0
      %264 = vmatprep.subr.bf16.mxu0 0
      %265 = vmatpush1.bf16.msra.mxu0 0
      %266 = vmatprep.mubr.bf16.mxu0 0
      %267 = vmatmul.mubr.bf16.gmra.mrb[0].mxu0 %v232
      %v268 = vpop.f32.mrb[0].mxu0
      %v269 = vadd.f32 0.0, %v268
      %v270 = vpop.f32.mrb[0].mxu0
      %v271 = vpop.f32.mrb[0].mxu0
      %v272 = vadd.f32 0.0, %v271
      %v273 = vpop.f32.mrb[0].mxu0
      %274 = vdwg.mxu0
      %v283 = vunpack.c.l.b16 %v186
      %v284 = vunpack.c.l.b16 %v187
      %v285 = vunpack.c.l.b16 %v188
      %v286 = vunpack.c.l.b16 %v189
      %v287 = vunpack.c.l.b16 %v190
      %v288 = vunpack.c.l.b16 %v191
      %v289 = vunpack.c.l.b16 %v192
      %v290 = vunpack.c.l.b16 %v193
      %v291 = vpack.c.b16 %v284, %v283
      %v292 = vpack.c.b16 %v286, %v285
      %v293 = vpack.c.b16 %v288, %v287
      %v294 = vpack.c.b16 %v290, %v289
      %v300 = vsel %vm230, %v185, 0
      %302 = vmatprep.subr.bf16.mxu0 0
      %303 = vmatpush1.bf16.msra.mxu0 %v291
      %304 = vmatprep.subr.bf16.mxu0 0
      %305 = vmatpush1.bf16.msra.mxu0 %v292
      %306 = vmatprep.subr.bf16.mxu0 0
      %307 = vmatpush1.bf16.msra.mxu0 %v293
      %308 = vmatprep.subr.bf16.mxu0 0
      %309 = vmatpush1.bf16.msra.mxu0 %v294
      %310 = vmatprep.subr.bf16.mxu0 0
      %311 = vmatpush1.bf16.msra.mxu0 0
      %312 = vmatprep.subr.bf16.mxu0 0
      %313 = vmatpush1.bf16.msra.mxu0 0
      %314 = vmatprep.subr.bf16.mxu0 0
      %315 = vmatpush1.bf16.msra.mxu0 0
      %316 = vmatprep.subr.bf16.mxu0 0
      %317 = vmatpush1.bf16.msra.mxu0 0
      %318 = vmatprep.subr.bf16.mxu0 0
      %319 = vmatpush1.bf16.msra.mxu0 0
      %320 = vmatprep.subr.bf16.mxu0 0
      %321 = vmatpush1.bf16.msra.mxu0 0
      %322 = vmatprep.subr.bf16.mxu0 0
      %323 = vmatpush1.bf16.msra.mxu0 0
      %324 = vmatprep.subr.bf16.mxu0 0
      %325 = vmatpush1.bf16.msra.mxu0 0
      %326 = vmatprep.subr.bf16.mxu0 0
      %327 = vmatpush1.bf16.msra.mxu0 0
      %328 = vmatprep.subr.bf16.mxu0 0
      %329 = vmatpush1.bf16.msra.mxu0 0
      %330 = vmatprep.subr.bf16.mxu0 0
      %331 = vmatpush1.bf16.msra.mxu0 0
      %332 = vmatprep.subr.bf16.mxu0 0
      %333 = vmatpush1.bf16.msra.mxu0 0
      %334 = vmatprep.mubr.bf16.mxu0 0
      %335 = vmatmul.mubr.bf16.gmra.mrb[0].mxu0 %v300
      %v336 = vpop.f32.mrb[0].mxu0
      %v337 = vadd.f32 %v269, %v336
      %v338 = vpop.f32.mrb[0].mxu0
      %v339 = vpop.f32.mrb[0].mxu0
      %v340 = vadd.f32 %v272, %v339
      %v341 = vpop.f32.mrb[0].mxu0
      %342 = vdwg.mxu0
      %v343 = vld [vmem:[%s172 + $0x2] sm:$0xff]
      %v344 = vld [vmem:[%s172 + $0xa] sm:$0xff]
      %v345 = vpack.c.bf16 %v344, %v343
      %s346 = scalar_lea.vmem %s1, 64
      %v347 = vld [vmem:[%s346] sm:$0xf]
      %v348 = vld [vmem:[%s346 + $0x4] sm:$0xf]
      %v349 = vld [vmem:[%s346 + $0x8] sm:$0xf]
      %v350 = vld [vmem:[%s346 + $0xc] sm:$0xf]
      %v351 = vld [vmem:[%s346 + $0x10] sm:$0xf]
      %v352 = vld [vmem:[%s346 + $0x14] sm:$0xf]
      %v353 = vld [vmem:[%s346 + $0x18] sm:$0xf]
      %v354 = vld [vmem:[%s346 + $0x1c] sm:$0xf]
      %v363 = vunpack.c.l.b16 %v347
      %v364 = vunpack.c.l.b16 %v348
      %v365 = vunpack.c.l.b16 %v349
      %v366 = vunpack.c.l.b16 %v350
      %v367 = vunpack.c.l.b16 %v351
      %v368 = vunpack.c.l.b16 %v352
      %v369 = vunpack.c.l.b16 %v353
      %v370 = vunpack.c.l.b16 %v354
      %v371 = vpack.c.b16 %v364, %v363
      %v372 = vpack.c.b16 %v366, %v365
      %v373 = vpack.c.b16 %v368, %v367
      %v374 = vpack.c.b16 %v370, %v369
      %v380 = vsel %vm230, %v345, 0
      %382 = vmatprep.subr.bf16.mxu0 0
      %383 = vmatpush1.bf16.msra.mxu0 %v371
      %384 = vmatprep.subr.bf16.mxu0 0
      %385 = vmatpush1.bf16.msra.mxu0 %v372
      %386 = vmatprep.subr.bf16.mxu0 0
      %387 = vmatpush1.bf16.msra.mxu0 %v373
      %388 = vmatprep.subr.bf16.mxu0 0
      %389 = vmatpush1.bf16.msra.mxu0 %v374
      %390 = vmatprep.subr.bf16.mxu0 0
      %391 = vmatpush1.bf16.msra.mxu0 0
      %392 = vmatprep.subr.bf16.mxu0 0
      %393 = vmatpush1.bf16.msra.mxu0 0
      %394 = vmatprep.subr.bf16.mxu0 0
      %395 = vmatpush1.bf16.msra.mxu0 0
      %396 = vmatprep.subr.bf16.mxu0 0
      %397 = vmatpush1.bf16.msra.mxu0 0
      %398 = vmatprep.subr.bf16.mxu0 0
      %399 = vmatpush1.bf16.msra.mxu0 0
      %400 = vmatprep.subr.bf16.mxu0 0
      %401 = vmatpush1.bf16.msra.mxu0 0
      %402 = vmatprep.subr.bf16.mxu0 0
      %403 = vmatpush1.bf16.msra.mxu0 0
      %404 = vmatprep.subr.bf16.mxu0 0
      %405 = vmatpush1.bf16.msra.mxu0 0
      %406 = vmatprep.subr.bf16.mxu0 0
      %407 = vmatpush1.bf16.msra.mxu0 0
      %408 = vmatprep.subr.bf16.mxu0 0
      %409 = vmatpush1.bf16.msra.mxu0 0
      %410 = vmatprep.subr.bf16.mxu0 0
      %411 = vmatpush1.bf16.msra.mxu0 0
      %412 = vmatprep.subr.bf16.mxu0 0
      %413 = vmatpush1.bf16.msra.mxu0 0
      %414 = vmatprep.mubr.bf16.mxu0 0
      %415 = vmatmul.mubr.bf16.gmra.mrb[0].mxu0 %v380
      %v416 = vpop.f32.mrb[0].mxu0
      %v417 = vadd.f32 0.0, %v416
      %v418 = vpop.f32.mrb[0].mxu0
      %v419 = vpop.f32.mrb[0].mxu0
      %v420 = vadd.f32 0.0, %v419
      %v421 = vpop.f32.mrb[0].mxu0
      %422 = vdwg.mxu0
      %v423 = vadd.f32 %v337, %v417
      %v424 = vadd.f32 %v340, %v420
      %v425 = vsel %vm230, %v423, 0.0
      %v426 = vsel %vm230, %v424, 0.0
      %v427 = vadd.f32 %v425, %v426
      %v428 = vrot.slane %v427, 4
      %v429 = vadd.f32 %v427, %v428
      %v430 = vrot.slane %v429, 2
      %v431 = vadd.f32 %v429, %v430
      %v432 = vrot.slane %v431, 1
      %v433 = vadd.f32 %v431, %v432
      %vm434 = vcmask 516096
      %435 = vst.msk [vmem:[%s181] sm:$0x1] %vm434, %v433
      %v436 = vmul.f32 %v423, %v423
      %v437 = vmul.f32 %v424, %v424
      %v438 = vsel %vm230, %v436, 0.0
      %v439 = vsel %vm230, %v437, 0.0
      %v440 = vadd.f32 %v438, %v439
      %v441 = vrot.slane %v440, 4
      %v442 = vadd.f32 %v440, %v441
      %v443 = vrot.slane %v442, 2
      %v444 = vadd.f32 %v442, %v443
      %v445 = vrot.slane %v444, 1
      %v446 = vadd.f32 %v444, %v445
      %447 = vst.msk [vmem:[%s181 + $0x1] sm:$0x1] %vm434, %v446
      %vm448 = vcmask 516096
      %vm449 = vsmask.f32 256
      %vm450 = vmand %vm448, %vm449
      %v451 = vld [vmem:[%s177] sm:$0x1]
      %v452 = vsel %vm450, 0, %v451
      %453 = vst [vmem:[%s177] sm:$0x1] %v452
      %vm454 = vsmask.f32 7938
      %vm455 = vmand %vm448, %vm454
      %v456 = vld [vmem:[%s177 + $0x8] sm:$0x1]
      %v457 = vsel %vm455, 0, %v456
      %458 = vst [vmem:[%s177 + $0x8] sm:$0x1] %v457
      %v459 = vpack.c.bf16 %v424, %v423
      %v461 = vunpack.c.l.b16 %v459
      %v462 = vunpack.c.h.b16 %v459
      %v463 = vpack.c.b16 %v461, %v461
      %v464 = vpack.c.b16 %v462, %v462
      %vm465 = vsmask.f32 4368
      %vm466 = vmor %vm449, %vm465
      %v468 = vshrl.u32 %v463, 16
      %v470 = vrot.slane %v468, 7
      %v471 = vshll.u32 %v463, 16
      %v473 = vor.u32 %v470, %v471
      %v474 = vrot.slane %v470, 4
      %v476 = vshrl.u32 %v464, 16
      %v478 = vrot.slane %v476, 7
      %v479 = vshll.u32 %v464, 16
      %v481 = vor.u32 %v478, %v479
      %v482 = vsel %vm466, %v474, %v481
      %v483 = vrot.slane %v478, 4
      %vm487 = vcmask 519168
      %vm488 = vmand %vm487, %vm454
      %v489 = vld [vmem:[%s177] sm:$0xf]
      %v490 = vsel %vm488, %v473, %v489
      %491 = vst [vmem:[%s177] sm:$0xf] %v490
      %vm492 = vcmask 519168
      %493 = vst.msk [vmem:[%s177 + $0x4] sm:$0xf] %vm492, %v482
      %v494 = vld [vmem:[%s177 + $0x8] sm:$0x1]
      %v495 = vsel %vm450, %v483, %v494
      %496 = vst [vmem:[%s177 + $0x8] sm:$0x1] %v495
      %p497 = scmp.lt.s32.totalorder %s15, 1
      %s498 = scalar_select %p497, %s15, 1
      %s499 = smul.addr %s498, 3
      %s500 = smul.addr %s499, 4
      %s501 = scalar_lea.vmem %s2, %s500
      %p502 = scmp.lt.s32.totalorder %s15, 1
      %s503 = scalar_select %p502, %s15, 1
      %s504 = smul.addr %s503, 2
      %s505 = scalar_lea.vmem %s3, %s504
      // Predicated region
      $region29: #{resblock_forward.3} parent=27 // pred_check
        %p506 = pneg %p80
      $region30: #{resblock_forward.3} parent=27 // pred_check_branch
        %508 = sbr.rel (%p506) target = $region32
      $region31: #{resblock_forward.3} parent=27 // pred_region
        _
      $region32: #{resblock_forward.3} parent=27 // pred_fallthru
        _
      // Predicated region
      $region33: #{resblock_forward.3} parent=27 // pred_check
        %p509 = pneg %p106
      $region34: #{resblock_forward.3} parent=27 // pred_check_branch
        %511 = sbr.rel (%p509) target = $region36
      $region35: #{resblock_forward.3} parent=27 // pred_region
        _
      $region36: #{resblock_forward.3} parent=27 // pred_fallthru
        _
    $region28: #{resblock_forward.3} parent=5 // pred_fallthru
      _
    %p512 = scmp.le.s32.totalorder 2, %s10
    // Predicated region
    $region37: #{resblock_forward.3} parent=5 // pred_check
      %p513 = pneg %p512
    $region38: #{resblock_forward.3} parent=5 // pred_check_branch
      %515 = sbr.rel (%p513) target = $region40
    $region39: #{resblock_forward.3} parent=5 // pred_region
      %s516 = ssub.s32 %s10, 2
      // Predicated region
      $region41: #{resblock_forward.3} parent=39 // pred_check
        %p517 = pneg %p86
      $region42: #{resblock_forward.3} parent=39 // pred_check_branch
        %519 = sbr.rel (%p517) target = $region44
      $region43: #{resblock_forward.3} parent=39 // pred_region
        %p520 = scmp.lt.s32.totalorder %s16, 1
        %s521 = scalar_select %p520, %s16, 1
        %s522 = smul.addr %s521, 3
        %s523 = smul.addr %s522, 4
        %s524 = scalar_lea.vmem %s2, %s523
      $region44: #{resblock_forward.3} parent=39 // pred_fallthru
        _
      // Predicated region
      $region45: #{resblock_forward.3} parent=39 // pred_check
        %p525 = pneg %p112
      $region46: #{resblock_forward.3} parent=39 // pred_check_branch
        %527 = sbr.rel (%p525) target = $region48
      $region47: #{resblock_forward.3} parent=39 // pred_region
        %p528 = scmp.lt.s32.totalorder %s16, 1
        %s529 = scalar_select %p528, %s16, 1
        %s530 = smul.addr %s529, 2
        %s531 = scalar_lea.vmem %s3, %s530
      $region48: #{resblock_forward.3} parent=39 // pred_fallthru
        _
    $region40: #{resblock_forward.3} parent=5 // pred_fallthru
      _
  $region6: #{resblock_forward.3} parent=0 // loop_footer
    %s14 = sadd.s32 1, %s10
  $region7: #{resblock_forward.3} parent=0 // loop_footer_branch
    %9 = sbr.rel target = $region3
  $region8: #{resblock_forward.3} parent=0 // loop_exit
    _

// kernel: resblock_forward.4
$region0: #{resblock_forward.4}
  #allocation0 [shape = 'u32[]', space=smem, size = 0x4, offset = 0x4, fixed_abs, tag = 'smem constant byte address 0x4 - core index']
  #allocation1 [shape = 'u32[144,128]{1,0:T(1,128)}', space=vmem, size = 0x12000, scoped, tag = 'internal scratch']
  %s0 = inlined_call_operand.vmem [shape: bf16[2,18,64], index: 0, kind: input, shape index: {}]
  %s1 = inlined_call_operand.vmem [shape: bf16[3,64,64], index: 1, kind: input, shape index: {}]
  %s2 = inlined_call_operand.vmem [shape: f32[1,64], index: 2, kind: input, shape index: {}]
  %s3 = inlined_call_operand.vmem [shape: f32[1,64], index: 3, kind: input, shape index: {}]
  %s4 = inlined_call_operand.vmem [shape: bf16[2,16,64], index: 4, kind: output, shape index: {0}]
  %s5 = inlined_call_operand.vmem [shape: f32[2,2,64], index: 5, kind: output, shape index: {1}]
  %6 = xla_tuple %s4, %s5
  %s7 = sld [smem:[#allocation0]]
  $region57: #{resblock_forward.4} parent=0
    _
  %s9 = ssub.s32 1, %s7
  %s10 = scalar_select 0, %s9, %s7
  loop: start=0, step=1, limit=4
  $region2: #{resblock_forward.4} parent=0 // loop_pre_header
    _
  $region3: #{resblock_forward.4} parent=0 // loop_header
    %s12 = sphi 0, %s16
    %p13 = scmp.ge.s32.totalorder %s12, 4
    %s22 = sphi 0, %s24
    %s25 = sphi 0, %s22
    %s26 = sphi 0, %s25
    %s42 = sphi 0, %s26
    %s46 = sphi 0, %s46
    %s48 = sphi 0, %s46
    %s49 = sphi 0, %s48
    %s63 = sphi 0, %s49
    %s67 = sphi 0, %s67
    %s69 = sphi 0, %s67
    %s70 = sphi 0, %s69
    %s84 = sphi 0, %s70
    %s88 = sphi 0, %s88
    %s90 = sphi 0, %s88
    %s91 = sphi 0, %s90
    %s105 = sphi 0, %s91
    %s111 = sphi 0, %s113
    %s114 = sphi 0, %s111
    %s115 = sphi 0, %s114
    %s131 = sphi 0, %s115
    %s137 = sphi 0, %s139
    %s140 = sphi 0, %s137
    %s141 = sphi 0, %s140
    %s157 = sphi 0, %s141
  $region4: #{resblock_forward.4} parent=0 // loop_header_branch
    %15 = sbr.rel (%p13) target = $region8
  $region5: #{resblock_forward.4} parent=0 // loop_body
    %s17 = ssub.s32 %s12, 1
    %s18 = ssub.s32 %s12, 2
    %s19 = sadd.s32 %s12, 1
    %s20 = ssub.s32 %s12, %s19
    %p21 = scmp.eq.s32.totalorder %s20, 0
    %s23 = sadd.s32 %s22, 1
    %s24 = scalar_select %p21, %s22, %s23
    %p27 = pneg %p21
    %p28 = scmp.eq.s32.totalorder %s12, 1
    %p29 = por %p27, %p28
    %p30 = scmp.ne.s32.totalorder %s22, %s25
    %p31 = scmp.eq.s32.totalorder %s12, 0
    %p32 = por %p30, %p31
    %p33 = scmp.ne.s32.totalorder %s22, %s25
    %p34 = scmp.eq.s32.totalorder %s17, 1
    %p35 = por %p33, %p34
    %p36 = scmp.ne.s32.totalorder %s25, %s26
    %p37 = scmp.eq.s32.totalorder %s17, 0
    %p38 = por %p36, %p37
    %p39 = scmp.ne.s32.totalorder %s25, %s26
    %p40 = scmp.eq.s32.totalorder %s18, 1
    %p41 = por %p39, %p40
    %p43 = scmp.ne.s32.totalorder %s26, %s42
    %p44 = scmp.eq.s32.totalorder %s18, 0
    %p45 = por %p43, %p44
    %s47 = sadd.s32 %s46, 1
    %p50 = scmp.eq.s32.totalorder %s12, 1
    %p51 = scmp.ne.s32.totalorder %s46, %s48
    %p52 = scmp.eq.s32.totalorder %s12, 0
    %p53 = por %p51, %p52
    %p54 = scmp.ne.s32.totalorder %s46, %s48
    %p55 = scmp.eq.s32.totalorder %s17, 1
    %p56 = por %p54, %p55
    %p57 = scmp.ne.s32.totalorder %s48, %s49
    %p58 = scmp.eq.s32.totalorder %s17, 0
    %p59 = por %p57, %p58
    %p60 = scmp.ne.s32.totalorder %s48, %s49
    %p61 = scmp.eq.s32.totalorder %s18, 1
    %p62 = por %p60, %p61
    %p64 = scmp.ne.s32.totalorder %s49, %s63
    %p65 = scmp.eq.s32.totalorder %s18, 0
    %p66 = por %p64, %p65
    %s68 = sadd.s32 %s67, 1
    %p71 = scmp.eq.s32.totalorder %s12, 1
    %p72 = scmp.ne.s32.totalorder %s67, %s69
    %p73 = scmp.eq.s32.totalorder %s12, 0
    %p74 = por %p72, %p73
    %p75 = scmp.ne.s32.totalorder %s67, %s69
    %p76 = scmp.eq.s32.totalorder %s17, 1
    %p77 = por %p75, %p76
    %p78 = scmp.ne.s32.totalorder %s69, %s70
    %p79 = scmp.eq.s32.totalorder %s17, 0
    %p80 = por %p78, %p79
    %p81 = scmp.ne.s32.totalorder %s69, %s70
    %p82 = scmp.eq.s32.totalorder %s18, 1
    %p83 = por %p81, %p82
    %p85 = scmp.ne.s32.totalorder %s70, %s84
    %p86 = scmp.eq.s32.totalorder %s18, 0
    %p87 = por %p85, %p86
    %s89 = sadd.s32 %s88, 1
    %p92 = scmp.eq.s32.totalorder %s12, 1
    %p93 = scmp.ne.s32.totalorder %s88, %s90
    %p94 = scmp.eq.s32.totalorder %s12, 0
    %p95 = por %p93, %p94
    %p96 = scmp.ne.s32.totalorder %s88, %s90
    %p97 = scmp.eq.s32.totalorder %s17, 1
    %p98 = por %p96, %p97
    %p99 = scmp.ne.s32.totalorder %s90, %s91
    %p100 = scmp.eq.s32.totalorder %s17, 0
    %p101 = por %p99, %p100
    %p102 = scmp.ne.s32.totalorder %s90, %s91
    %p103 = scmp.eq.s32.totalorder %s18, 1
    %p104 = por %p102, %p103
    %p106 = scmp.ne.s32.totalorder %s91, %s105
    %p107 = scmp.eq.s32.totalorder %s18, 0
    %p108 = por %p106, %p107
    %s109 = ssub.s32 %s12, %s19
    %p110 = scmp.eq.s32.totalorder %s109, 0
    %s112 = sadd.s32 %s111, 1
    %s113 = scalar_select %p110, %s111, %s112
    %p116 = pneg %p110
    %p117 = scmp.eq.s32.totalorder %s12, 1
    %p118 = por %p116, %p117
    %p119 = scmp.ne.s32.totalorder %s111, %s114
    %p120 = scmp.eq.s32.totalorder %s12, 0
    %p121 = por %p119, %p120
    %p122 = scmp.ne.s32.totalorder %s111, %s114
    %p123 = scmp.eq.s32.totalorder %s17, 1
    %p124 = por %p122, %p123
    %p125 = scmp.ne.s32.totalorder %s114, %s115
    %p126 = scmp.eq.s32.totalorder %s17, 0
    %p127 = por %p125, %p126
    %p128 = scmp.ne.s32.totalorder %s114, %s115
    %p129 = scmp.eq.s32.totalorder %s18, 1
    %p130 = por %p128, %p129
    %p132 = scmp.ne.s32.totalorder %s115, %s131
    %p133 = scmp.eq.s32.totalorder %s18, 0
    %p134 = por %p132, %p133
    %s135 = ssub.s32 %s12, %s19
    %p136 = scmp.eq.s32.totalorder %s135, 0
    %s138 = sadd.s32 %s137, 1
    %s139 = scalar_select %p136, %s137, %s138
    %p142 = pneg %p136
    %p143 = scmp.eq.s32.totalorder %s12, 1
    %p144 = por %p142, %p143
    %p145 = scmp.ne.s32.totalorder %s137, %s140
    %p146 = scmp.eq.s32.totalorder %s12, 0
    %p147 = por %p145, %p146
    %p148 = scmp.ne.s32.totalorder %s137, %s140
    %p149 = scmp.eq.s32.totalorder %s17, 1
    %p150 = por %p148, %p149
    %p151 = scmp.ne.s32.totalorder %s140, %s141
    %p152 = scmp.eq.s32.totalorder %s17, 0
    %p153 = por %p151, %p152
    %p154 = scmp.ne.s32.totalorder %s140, %s141
    %p155 = scmp.eq.s32.totalorder %s18, 1
    %p156 = por %p154, %p155
    %p158 = scmp.ne.s32.totalorder %s141, %s157
    %p159 = scmp.eq.s32.totalorder %s18, 0
    %p160 = por %p158, %p159
    %p161 = scmp.le.s32.totalorder 1, %s12
    %p162 = scmp.lt.s32.totalorder %s12, 3
    %p163 = pnand %p161, %p162
    %p164 = pneg %p163
    // Predicated region
    $region9: #{resblock_forward.4} parent=5 // pred_check
      _
    $region10: #{resblock_forward.4} parent=5 // pred_check_branch
      %166 = sbr.rel (%p163) target = $region12
    $region11: #{resblock_forward.4} parent=5 // pred_region
      %s167 = ssub.s32 %s12, 1
      // Predicated region
      $region13: #{resblock_forward.4} parent=11 // pred_check
        %p168 = pneg %p59
      $region14: #{resblock_forward.4} parent=11 // pred_check_branch
        %170 = sbr.rel (%p168) target = $region16
      $region15: #{resblock_forward.4} parent=11 // pred_region
        _
      $region16: #{resblock_forward.4} parent=11 // pred_fallthru
        _
      // Predicated region
      $region17: #{resblock_forward.4} parent=11 // pred_check
        %p171 = pneg %p80
      $region18: #{resblock_forward.4} parent=11 // pred_check_branch
        %173 = sbr.rel (%p171) target = $region20
      $region19: #{resblock_forward.4} parent=11 // pred_region
        _
      $region20: #{resblock_forward.4} parent=11 // pred_fallthru
        _
      // Predicated region
      $region21: #{resblock_forward.4} parent=11 // pred_check
        %p174 = pneg %p101
      $region22: #{resblock_forward.4} parent=11 // pred_check_branch
        %176 = sbr.rel (%p174) target = $region24
      $region23: #{resblock_forward.4} parent=11 // pred_region
        _
      $region24: #{resblock_forward.4} parent=11 // pred_fallthru
        _
    $region12: #{resblock_forward.4} parent=5 // pred_fallthru
      _
    %p177 = scmp.lt.s32.totalorder %s12, 2
    // Predicated region
    $region25: #{resblock_forward.4} parent=5 // pred_check
      %p178 = pneg %p177
    $region26: #{resblock_forward.4} parent=5 // pred_check_branch
      %180 = sbr.rel (%p178) target = $region28
    $region27: #{resblock_forward.4} parent=5 // pred_region
      // Predicated region
      $region29: #{resblock_forward.4} parent=27 // pred_check
        %p181 = pneg %p32
      $region30: #{resblock_forward.4} parent=27 // pred_check_branch
        %183 = sbr.rel (%p181) target = $region32
      $region31: #{resblock_forward.4} parent=27 // pred_region
        %p184 = scmp.lt.s32.totalorder %s12, 1
        %s185 = scalar_select %p184, %s12, 1
        %s186 = smul.addr %s185, 3
        %s187 = smul.addr %s186, 4
        %s188 = scalar_lea.vmem %s0, %s187
      $region32: #{resblock_forward.4} parent=27 // pred_fallthru
        _
    $region28: #{resblock_forward.4} parent=5 // pred_fallthru
      _
    %p189 = scmp.le.s32.totalorder 1, %s12
    %p190 = scmp.lt.s32.totalorder %s12, 3
    %p191 = pnand %p189, %p190
    %p192 = pneg %p191
    // Predicated region
    $region33: #{resblock_forward.4} parent=5 // pred_check
      _
    $region34: #{resblock_forward.4} parent=5 // pred_check_branch
      %194 = sbr.rel (%p191) target = $region36
    $region35: #{resblock_forward.4} parent=5 // pred_region
      %s195 = ssub.s32 %s12, 1
      %p196 = scmp.lt.s32.totalorder %s17, 1
      %s197 = scalar_select %p196, %s17, 1
      %s198 = smul.addr %s197, 3
      %s199 = smul.addr %s198, 4
      %s200 = scalar_lea.vmem %s0, %s199
      %p201 = pneg %p38
      %p202 = pneg %p35
      %p203 = pneg %p59
      %p204 = pneg %p56
      %p205 = pneg %p80
      %p206 = pneg %p77
      %p207 = pneg %p101
      %p208 = pneg %p98
      %p209 = pneg %p127
      %p210 = pneg %p124
      %p211 = scmp.lt.s32.totalorder %s17, 1
      %s212 = scalar_select %p211, %s17, 1
      %s213 = smul.addr %s212, 2
      %s214 = smul.addr %s213, 4
      %s215 = scalar_lea.vmem %s4, %s214
      %p216 = pneg %p153
      %p217 = pneg %p150
      %p218 = scmp.lt.s32.totalorder %s17, 1
      %s219 = scalar_select %p218, %s17, 1
      %s220 = smul.addr %s219, 2
      %s221 = scalar_lea.vmem %s5, %s220
      %p222 = scmp.lt.s32.totalorder %s17, 1
      %s223 = scalar_select %p222, %s17, 1
      %s224 = smul.addr %s223, 3
      %s225 = smul.addr %s224, 4
      %s226 = scalar_lea.vmem %s0, %s225
      %p227 = scmp.lt.s32.totalorder %s17, 1
      %s228 = scalar_select %p227, %s17, 1
      %s229 = smul.addr %s228, 2
      %s230 = smul.addr %s229, 4
      %s231 = scalar_lea.vmem %s4, %s230
      %p232 = scmp.lt.s32.totalorder %s17, 1
      %s233 = scalar_select %p232, %s17, 1
      %s234 = smul.addr %s233, 2
      %s235 = scalar_lea.vmem %s5, %s234
      %v237 = vld [vmem:[%s226] sm:$0xf]
      %v238 = vld [vmem:[%s226 + $0x4] sm:$0xf]
      %v239 = vld [vmem:[%s226 + $0x8] sm:$0x1]
      %v240 = vunpack.c.l.bf16 %v237
      %v241 = vunpack.c.l.bf16 %v238
      %v242 = vunpack.c.l.bf16 %v239
      %v243 = vld [vmem:[%s2] sm:$0x1]
      %v245 = vlaneseq
      %v246 = vshrl.u32 %v245, 7
      %v247 = vsub.s32 0, %v246
      %v248 = vrot.slane %v243, %v247
      %v250 = vmul.f32 %v240, %v248
      %v251 = vmul.f32 %v241, %v248
      %v252 = vmul.f32 %v242, %v248
      %v253 = vld [vmem:[%s3] sm:$0x1]
      %v255 = vlaneseq
      %v256 = vshrl.u32 %v255, 7
      %v257 = vsub.s32 0, %v256
      %v258 = vrot.slane %v253, %v257
      %v260 = vadd.f32 %v250, %v258
      %v261 = vadd.f32 %v251, %v258
      %v262 = vadd.f32 %v252, %v258
      %v263 = vmax.f32 %v260, 0.0
      %v264 = vmax.f32 %v261, 0.0
      %v265 = vmax.f32 %v262, 0.0
      %v266 = vlaneseq
      %v267 = vshrl.u32 %v266, 7
      %v268 = vadd.s32 %v267, 8
      %v269 = vadd.s32 %v267, 16
      %vm270 = vcmp.ge.s32.totalorder %v267, 1
      %vm271 = vcmp.ge.s32.totalorder %v268, 1
      %vm272 = vcmp.ge.s32.totalorder %v269, 1
      %vm273 = vcmp.le.s32.totalorder %v267, 16
      %vm274 = vcmp.le.s32.totalorder %v268, 16
      %vm275 = vcmp.le.s32.totalorder %v269, 16
      %vm276 = vmand %vm270, %vm273
      %vm277 = vmand %vm271, %vm274
      %vm278 = vmand %vm272, %vm275
      %v279 = vsel %vm276, %v263, 0.0
      %v280 = vsel %vm277, %v264, 0.0
      %v281 = vsel %vm278, %v265, 0.0
      %v282 = vpack.c.bf16 %v280, %v279
      %v283 = vpack.c.bf16 %v281, %v281
      %v284 = vld [vmem:[%s1] sm:$0xf]
      %v285 = vld [vmem:[%s1 + $0x4] sm:$0xf]
      %v286 = vld [vmem:[%s1 + $0x8] sm:$0xf]
      %v287 = vld [vmem:[%s1 + $0xc] sm:$0xf]
      %v288 = vld [vmem:[%s1 + $0x10] sm:$0xf]
      %v289 = vld [vmem:[%s1 + $0x14] sm:$0xf]
      %v290 = vld [vmem:[%s1 + $0x18] sm:$0xf]
      %v291 = vld [vmem:[%s1 + $0x1c] sm:$0xf]
      %s292 = scalar_lea.vmem %s1, 32
      %v293 = vld [vmem:[%s292] sm:$0xf]
      %v294 = vld [vmem:[%s292 + $0x4] sm:$0xf]
      %v295 = vld [vmem:[%s292 + $0x8] sm:$0xf]
      %v296 = vld [vmem:[%s292 + $0xc] sm:$0xf]
      %v297 = vld [vmem:[%s292 + $0x10] sm:$0xf]
      %v298 = vld [vmem:[%s292 + $0x14] sm:$0xf]
      %v299 = vld [vmem:[%s292 + $0x18] sm:$0xf]
      %v300 = vld [vmem:[%s292 + $0x1c] sm:$0xf]
      %vm301 = vsmask.f32 7424
      %v303 = vshrl.u32 %v282, 16
      %v305 = vshll.u32 %v282, 16
      %v307 = vrot.slane %v305, 1
      %v308 = vor.u32 %v303, %v307
      %v310 = vshll.u32 %v283, 16
      %v312 = vrot.slane %v310, 1
      %v313 = vsel %vm301, %v308, %v312
      %v322 = vunpack.c.l.b16 %v293
      %v323 = vunpack.c.l.b16 %v294
      %v324 = vunpack.c.l.b16 %v295
      %v325 = vunpack.c.l.b16 %v296
      %v326 = vunpack.c.l.b16 %v297
      %v327 = vunpack.c.l.b16 %v298
      %v328 = vunpack.c.l.b16 %v299
      %v329 = vunpack.c.l.b16 %v300
      %v330 = vpack.c.b16 %v323, %v322
      %v331 = vpack.c.b16 %v325, %v324
      %v332 = vpack.c.b16 %v327, %v326
      %v333 = vpack.c.b16 %v329, %v328
      %vm338 = vcmask 523264
      %v340 = vsel %vm338, %v313, 0
      %342 = vmatprep.subr.bf16.mxu0 0
      %343 = vmatpush1.bf16.msra.mxu0 %v330
      %344 = vmatprep.subr.bf16.mxu0 0
      %345 = vmatpush1.bf16.msra.mxu0 %v331
      %346 = vmatprep.subr.bf16.mxu0 0
      %347 = vmatpush1.bf16.msra.mxu0 %v332
      %348 = vmatprep.subr.bf16.mxu0 0
      %349 = vmatpush1.bf16.msra.mxu0 %v333
      %350 = vmatprep.subr.bf16.mxu0 0
      %351 = vmatpush1.bf16.msra.mxu0 0
      %352 = vmatprep.subr.bf16.mxu0 0
      %353 = vmatpush1.bf16.msra.mxu0 0
      %354 = vmatprep.subr.bf16.mxu0 0
      %355 = vmatpush1.bf16.msra.mxu0 0
      %356 = vmatprep.subr.bf16.mxu0 0
      %357 = vmatpush1.bf16.msra.mxu0 0
      %358 = vmatprep.subr.bf16.mxu0 0
      %359 = vmatpush1.bf16.msra.mxu0 0
      %360 = vmatprep.subr.bf16.mxu0 0
      %361 = vmatpush1.bf16.msra.mxu0 0
      %362 = vmatprep.subr.bf16.mxu0 0
      %363 = vmatpush1.bf16.msra.mxu0 0
      %364 = vmatprep.subr.bf16.mxu0 0
      %365 = vmatpush1.bf16.msra.mxu0 0
      %366 = vmatprep.subr.bf16.mxu0 0
      %367 = vmatpush1.bf16.msra.mxu0 0
      %368 = vmatprep.subr.bf16.mxu0 0
      %369 = vmatpush1.bf16.msra.mxu0 0
      %370 = vmatprep.subr.bf16.mxu0 0
      %371 = vmatpush1.bf16.msra.mxu0 0
      %372 = vmatprep.subr.bf16.mxu0 0
      %373 = vmatpush1.bf16.msra.mxu0 0
      %374 = vmatprep.mubr.bf16.mxu0 0
      %375 = vmatmul.mubr.bf16.gmra.mrb[0].mxu0 %v340
      %v376 = vpop.f32.mrb[0].mxu0
      %v377 = vadd.f32 0.0, %v376
      %v378 = vpop.f32.mrb[0].mxu0
      %v379 = vpop.f32.mrb[0].mxu0
      %v380 = vadd.f32 0.0, %v379
      %v381 = vpop.f32.mrb[0].mxu0
      %382 = vdwg.mxu0
      %v391 = vunpack.c.l.b16 %v284
      %v392 = vunpack.c.l.b16 %v285
      %v393 = vunpack.c.l.b16 %v286
      %v394 = vunpack.c.l.b16 %v287
      %v395 = vunpack.c.l.b16 %v288
      %v396 = vunpack.c.l.b16 %v289
      %v397 = vunpack.c.l.b16 %v290
      %v398 = vunpack.c.l.b16 %v291
      %v399 = vpack.c.b16 %v392, %v391
      %v400 = vpack.c.b16 %v394, %v393
      %v401 = vpack.c.b16 %v396, %v395
      %v402 = vpack.c.b16 %v398, %v397
      %v407 = vsel %vm338, %v282, 0
      %409 = vmatprep.subr.bf16.mxu0 0
      %410 = vmatpush1.bf16.msra.mxu0 %v399
      %411 = vmatprep.subr.bf16.mxu0 0
      %412 = vmatpush1.bf16.msra.mxu0 %v400
      %413 = vmatprep.subr.bf16.mxu0 0
      %414 = vmatpush1.bf16.msra.mxu0 %v401
      %415 = vmatprep.subr.bf16.mxu0 0
      %416 = vmatpush1.bf16.msra.mxu0 %v402
      %417 = vmatprep.subr.bf16.mxu0 0
      %418 = vmatpush1.bf16.msra.mxu0 0
      %419 = vmatprep.subr.bf16.mxu0 0
      %420 = vmatpush1.bf16.msra.mxu0 0
      %421 = vmatprep.subr.bf16.mxu0 0
      %422 = vmatpush1.bf16.msra.mxu0 0
      %423 = vmatprep.subr.bf16.mxu0 0
      %424 = vmatpush1.bf16.msra.mxu0 0
      %425 = vmatprep.subr.bf16.mxu0 0
      %426 = vmatpush1.bf16.msra.mxu0 0
      %427 = vmatprep.subr.bf16.mxu0 0
      %428 = vmatpush1.bf16.msra.mxu0 0
      %429 = vmatprep.subr.bf16.mxu0 0
      %430 = vmatpush1.bf16.msra.mxu0 0
      %431 = vmatprep.subr.bf16.mxu0 0
      %432 = vmatpush1.bf16.msra.mxu0 0
      %433 = vmatprep.subr.bf16.mxu0 0
      %434 = vmatpush1.bf16.msra.mxu0 0
      %435 = vmatprep.subr.bf16.mxu0 0
      %436 = vmatpush1.bf16.msra.mxu0 0
      %437 = vmatprep.subr.bf16.mxu0 0
      %438 = vmatpush1.bf16.msra.mxu0 0
      %439 = vmatprep.subr.bf16.mxu0 0
      %440 = vmatpush1.bf16.msra.mxu0 0
      %441 = vmatprep.mubr.bf16.mxu0 0
      %442 = vmatmul.mubr.bf16.gmra.mrb[0].mxu0 %v407
      %v443 = vpop.f32.mrb[0].mxu0
      %v444 = vadd.f32 %v377, %v443
      %v445 = vpop.f32.mrb[0].mxu0
      %v446 = vpop.f32.mrb[0].mxu0
      %v447 = vadd.f32 %v380, %v446
      %v448 = vpop.f32.mrb[0].mxu0
      %449 = vdwg.mxu0
      %s450 = scalar_lea.vmem %s1, 64
      %v451 = vld [vmem:[%s450] sm:$0xf]
      %v452 = vld [vmem:[%s450 + $0x4] sm:$0xf]
      %v453 = vld [vmem:[%s450 + $0x8] sm:$0xf]
      %v454 = vld [vmem:[%s450 + $0xc] sm:$0xf]
      %v455 = vld [vmem:[%s450 + $0x10] sm:$0xf]
      %v456 = vld [vmem:[%s450 + $0x14] sm:$0xf]
      %v457 = vld [vmem:[%s450 + $0x18] sm:$0xf]
      %v458 = vld [vmem:[%s450 + $0x1c] sm:$0xf]
      %vm461 = vcmask 1046528
      %v462 = vrot.slane %v282, 1
      %v463 = vrot.slane %v283, 1
      %v464 = vsel %vm461, %v462, %v463
      %v473 = vunpack.c.l.b16 %v451
      %v474 = vunpack.c.l.b16 %v452
      %v475 = vunpack.c.l.b16 %v453
      %v476 = vunpack.c.l.b16 %v454
      %v477 = vunpack.c.l.b16 %v455
      %v478 = vunpack.c.l.b16 %v456
      %v479 = vunpack.c.l.b16 %v457
      %v480 = vunpack.c.l.b16 %v458
      %v481 = vpack.c.b16 %v474, %v473
      %v482 = vpack.c.b16 %v476, %v475
      %v483 = vpack.c.b16 %v478, %v477
      %v484 = vpack.c.b16 %v480, %v479
      %v490 = vsel %vm338, %v464, 0
      %492 = vmatprep.subr.bf16.mxu0 0
      %493 = vmatpush1.bf16.msra.mxu0 %v481
      %494 = vmatprep.subr.bf16.mxu0 0
      %495 = vmatpush1.bf16.msra.mxu0 %v482
      %496 = vmatprep.subr.bf16.mxu0 0
      %497 = vmatpush1.bf16.msra.mxu0 %v483
      %498 = vmatprep.subr.bf16.mxu0 0
      %499 = vmatpush1.bf16.msra.mxu0 %v484
      %500 = vmatprep.subr.bf16.mxu0 0
      %501 = vmatpush1.bf16.msra.mxu0 0
      %502 = vmatprep.subr.bf16.mxu0 0
      %503 = vmatpush1.bf16.msra.mxu0 0
      %504 = vmatprep.subr.bf16.mxu0 0
      %505 = vmatpush1.bf16.msra.mxu0 0
      %506 = vmatprep.subr.bf16.mxu0 0
      %507 = vmatpush1.bf16.msra.mxu0 0
      %508 = vmatprep.subr.bf16.mxu0 0
      %509 = vmatpush1.bf16.msra.mxu0 0
      %510 = vmatprep.subr.bf16.mxu0 0
      %511 = vmatpush1.bf16.msra.mxu0 0
      %512 = vmatprep.subr.bf16.mxu0 0
      %513 = vmatpush1.bf16.msra.mxu0 0
      %514 = vmatprep.subr.bf16.mxu0 0
      %515 = vmatpush1.bf16.msra.mxu0 0
      %516 = vmatprep.subr.bf16.mxu0 0
      %517 = vmatpush1.bf16.msra.mxu0 0
      %518 = vmatprep.subr.bf16.mxu0 0
      %519 = vmatpush1.bf16.msra.mxu0 0
      %520 = vmatprep.subr.bf16.mxu0 0
      %521 = vmatpush1.bf16.msra.mxu0 0
      %522 = vmatprep.subr.bf16.mxu0 0
      %523 = vmatpush1.bf16.msra.mxu0 0
      %524 = vmatprep.mubr.bf16.mxu0 0
      %525 = vmatmul.mubr.bf16.gmra.mrb[0].mxu0 %v490
      %v526 = vpop.f32.mrb[0].mxu0
      %v527 = vadd.f32 0.0, %v526
      %v528 = vpop.f32.mrb[0].mxu0
      %v529 = vpop.f32.mrb[0].mxu0
      %v530 = vadd.f32 0.0, %v529
      %v531 = vpop.f32.mrb[0].mxu0
      %532 = vdwg.mxu0
      %v533 = vadd.f32 %v444, %v527
      %v534 = vadd.f32 %v447, %v530
      %v535 = vsel %vm338, %v533, 0.0
      %v536 = vsel %vm338, %v534, 0.0
      %v537 = vadd.f32 %v535, %v536
      %v538 = vrot.slane %v537, 4
      %v539 = vadd.f32 %v537, %v538
      %v540 = vrot.slane %v539, 2
      %v541 = vadd.f32 %v539, %v540
      %v542 = vrot.slane %v541, 1
      %v543 = vadd.f32 %v541, %v542
      %vm544 = vcmask 516096
      %545 = vst.msk [vmem:[%s235] sm:$0x1] %vm544, %v543
      %v546 = vmul.f32 %v533, %v533
      %v547 = vmul.f32 %v534, %v534
      %v548 = vsel %vm338, %v546, 0.0
      %v549 = vsel %vm338, %v547, 0.0
      %v550 = vadd.f32 %v548, %v549
      %v551 = vrot.slane %v550, 4
      %v552 = vadd.f32 %v550, %v551
      %v553 = vrot.slane %v552, 2
      %v554 = vadd.f32 %v552, %v553
      %v555 = vrot.slane %v554, 1
      %v556 = vadd.f32 %v554, %v555
      %557 = vst.msk [vmem:[%s235 + $0x1] sm:$0x1] %vm544, %v556
      %v558 = vpack.c.bf16 %v534, %v533
      %v560 = vunpack.c.l.b16 %v558
      %v561 = vunpack.c.h.b16 %v558
      %v562 = vpack.c.b16 %v560, %v560
      %v563 = vpack.c.b16 %v561, %v561
      %vm566 = vcmask 519168
      %567 = vst.msk [vmem:[%s231] sm:$0xf] %vm566, %v562
      %568 = vst.msk [vmem:[%s231 + $0x4] sm:$0xf] %vm566, %v563
      %p569 = scmp.lt.s32.totalorder %s17, 1
      %s570 = scalar_select %p569, %s17, 1
      %s571 = smul.addr %s570, 2
      %s572 = smul.addr %s571, 4
      %s573 = scalar_lea.vmem %s4, %s572
      %p574 = scmp.lt.s32.totalorder %s17, 1
      %s575 = scalar_select %p574, %s17, 1
      %s576 = smul.addr %s575, 2
      %s577 = scalar_lea.vmem %s5, %s576
      // Predicated region
      $region37: #{resblock_forward.4} parent=35 // pred_check
        %p578 = pneg %p124
      $region38: #{resblock_forward.4} parent=35 // pred_check_branch
        %580 = sbr.rel (%p578) target = $region40
      $region39: #{resblock_forward.4} parent=35 // pred_region
        _
      $region40: #{resblock_forward.4} parent=35 // pred_fallthru
        _
      // Predicated region
      $region41: #{resblock_forward.4} parent=35 // pred_check
        %p581 = pneg %p150
      $region42: #{resblock_forward.4} parent=35 // pred_check_branch
        %583 = sbr.rel (%p581) target = $region44
      $region43: #{resblock_forward.4} parent=35 // pred_region
        _
      $region44: #{resblock_forward.4} parent=35 // pred_fallthru
        _
    $region36: #{resblock_forward.4} parent=5 // pred_fallthru
      _
    %p584 = scmp.le.s32.totalorder 2, %s12
    // Predicated region
    $region45: #{resblock_forward.4} parent=5 // pred_check
      %p585 = pneg %p584
    $region46: #{resblock_forward.4} parent=5 // pred_check_branch
      %587 = sbr.rel (%p585) target = $region48
    $region47: #{resblock_forward.4} parent=5 // pred_region
      %s588 = ssub.s32 %s12, 2
      // Predicated region
      $region49: #{resblock_forward.4} parent=47 // pred_check
        %p589 = pneg %p130
      $region50: #{resblock_forward.4} parent=47 // pred_check_branch
        %591 = sbr.rel (%p589) target = $region52
      $region51: #{resblock_forward.4} parent=47 // pred_region
        %p592 = scmp.lt.s32.totalorder %s18, 1
        %s593 = scalar_select %p592, %s18, 1
        %s594 = smul.addr %s593, 2
        %s595 = smul.addr %s594, 4
        %s596 = scalar_lea.vmem %s4, %s595
      $region52: #{resblock_forward.4} parent=47 // pred_fallthru
        _
      // Predicated region
      $region53: #{resblock_forward.4} parent=47 // pred_check
        %p597 = pneg %p156
      $region54: #{resblock_forward.4} parent=47 // pred_check_branch
        %599 = sbr.rel (%p597) target = $region56
      $region55: #{resblock_forward.4} parent=47 // pred_region
        %p600 = scmp.lt.s32.totalorder %s18, 1
        %s601 = scalar_select %p600, %s18, 1
        %s602 = smul.addr %s601, 2
        %s603 = scalar_lea.vmem %s5, %s602
      $region56: #{resblock_forward.4} parent=47 // pred_fallthru
        _
    $region48: #{resblock_forward.4} parent=5 // pred_fallthru
      _
  $region6: #{resblock_forward.4} parent=0 // loop_footer
    %s16 = sadd.s32 1, %s12
  $region7: #{resblock_forward.4} parent=0 // loop_footer_branch
    %11 = sbr.rel target = $region3
  $region8: #{resblock_forward.4} parent=0 // loop_exit
    _

// kernel: resblock_forward.5
$region0: #{resblock_forward.5}
  #allocation0 [shape = 'u32[]', space=smem, size = 0x4, offset = 0x4, fixed_abs, tag = 'smem constant byte address 0x4 - core index']
  #allocation1 [shape = 'u32[144,128]{1,0:T(1,128)}', space=vmem, size = 0x12000, scoped, tag = 'internal scratch']
  %s0 = inlined_call_operand.vmem [shape: bf16[2,16,64], index: 0, kind: input, shape index: {}]
  %s1 = inlined_call_operand.vmem [shape: f32[2,16,64], index: 1, kind: input, shape index: {}]
  %s2 = inlined_call_operand.vmem [shape: f32[1,64], index: 2, kind: input, shape index: {}]
  %s3 = inlined_call_operand.vmem [shape: f32[1,64], index: 3, kind: input, shape index: {}]
  %s4 = inlined_call_operand.vmem [shape: f32[2,16,64], index: 4, kind: output, shape index: {}]
  %s5 = sld [smem:[#allocation0]]
  $region49: #{resblock_forward.5} parent=0
    _
  %s7 = ssub.s32 1, %s5
  %s8 = scalar_select 0, %s7, %s5
  loop: start=0, step=1, limit=4
  $region2: #{resblock_forward.5} parent=0 // loop_pre_header
    _
  $region3: #{resblock_forward.5} parent=0 // loop_header
    %s10 = sphi 0, %s14
    %p11 = scmp.ge.s32.totalorder %s10, 4
    %s20 = sphi 0, %s22
    %s23 = sphi 0, %s20
    %s24 = sphi 0, %s23
    %s40 = sphi 0, %s24
    %s46 = sphi 0, %s48
    %s49 = sphi 0, %s46
    %s50 = sphi 0, %s49
    %s66 = sphi 0, %s50
    %s70 = sphi 0, %s70
    %s72 = sphi 0, %s70
    %s73 = sphi 0, %s72
    %s87 = sphi 0, %s73
    %s91 = sphi 0, %s91
    %s93 = sphi 0, %s91
    %s94 = sphi 0, %s93
    %s108 = sphi 0, %s94
    %s114 = sphi 0, %s116
    %s117 = sphi 0, %s114
    %s118 = sphi 0, %s117
    %s134 = sphi 0, %s118
  $region4: #{resblock_forward.5} parent=0 // loop_header_branch
    %13 = sbr.rel (%p11) target = $region8
  $region5: #{resblock_forward.5} parent=0 // loop_body
    %s15 = ssub.s32 %s10, 1
    %s16 = ssub.s32 %s10, 2
    %s17 = sadd.s32 %s10, 1
    %s18 = ssub.s32 %s10, %s17
    %p19 = scmp.eq.s32.totalorder %s18, 0
    %s21 = sadd.s32 %s20, 1
    %s22 = scalar_select %p19, %s20, %s21
    %p25 = pneg %p19
    %p26 = scmp.eq.s32.totalorder %s10, 1
    %p27 = por %p25, %p26
    %p28 = scmp.ne.s32.totalorder %s20, %s23
    %p29 = scmp.eq.s32.totalorder %s10, 0
    %p30 = por %p28, %p29
    %p31 = scmp.ne.s32.totalorder %s20, %s23
    %p32 = scmp.eq.s32.totalorder %s15, 1
    %p33 = por %p31, %p32
    %p34 = scmp.ne.s32.totalorder %s23, %s24
    %p35 = scmp.eq.s32.totalorder %s15, 0
    %p36 = por %p34, %p35
    %p37 = scmp.ne.s32.totalorder %s23, %s24
    %p38 = scmp.eq.s32.totalorder %s16, 1
    %p39 = por %p37, %p38
    %p41 = scmp.ne.s32.totalorder %s24, %s40
    %p42 = scmp.eq.s32.totalorder %s16, 0
    %p43 = por %p41, %p42
    %s44 = ssub.s32 %s10, %s17
    %p45 = scmp.eq.s32.totalorder %s44, 0
    %s47 = sadd.s32 %s46, 1
    %s48 = scalar_select %p45, %s46, %s47
    %p51 = pneg %p45
    %p52 = scmp.eq.s32.totalorder %s10, 1
    %p53 = por %p51, %p52
    %p54 = scmp.ne.s32.totalorder %s46, %s49
    %p55 = scmp.eq.s32.totalorder %s10, 0
    %p56 = por %p54, %p55
    %p57 = scmp.ne.s32.totalorder %s46, %s49
    %p58 = scmp.eq.s32.totalorder %s15, 1
    %p59 = por %p57, %p58
    %p60 = scmp.ne.s32.totalorder %s49, %s50
    %p61 = scmp.eq.s32.totalorder %s15, 0
    %p62 = por %p60, %p61
    %p63 = scmp.ne.s32.totalorder %s49, %s50
    %p64 = scmp.eq.s32.totalorder %s16, 1
    %p65 = por %p63, %p64
    %p67 = scmp.ne.s32.totalorder %s50, %s66
    %p68 = scmp.eq.s32.totalorder %s16, 0
    %p69 = por %p67, %p68
    %s71 = sadd.s32 %s70, 1
    %p74 = scmp.eq.s32.totalorder %s10, 1
    %p75 = scmp.ne.s32.totalorder %s70, %s72
    %p76 = scmp.eq.s32.totalorder %s10, 0
    %p77 = por %p75, %p76
    %p78 = scmp.ne.s32.totalorder %s70, %s72
    %p79 = scmp.eq.s32.totalorder %s15, 1
    %p80 = por %p78, %p79
    %p81 = scmp.ne.s32.totalorder %s72, %s73
    %p82 = scmp.eq.s32.totalorder %s15, 0
    %p83 = por %p81, %p82
    %p84 = scmp.ne.s32.totalorder %s72, %s73
    %p85 = scmp.eq.s32.totalorder %s16, 1
    %p86 = por %p84, %p85
    %p88 = scmp.ne.s32.totalorder %s73, %s87
    %p89 = scmp.eq.s32.totalorder %s16, 0
    %p90 = por %p88, %p89
    %s92 = sadd.s32 %s91, 1
    %p95 = scmp.eq.s32.totalorder %s10, 1
    %p96 = scmp.ne.s32.totalorder %s91, %s93
    %p97 = scmp.eq.s32.totalorder %s10, 0
    %p98 = por %p96, %p97
    %p99 = scmp.ne.s32.totalorder %s91, %s93
    %p100 = scmp.eq.s32.totalorder %s15, 1
    %p101 = por %p99, %p100
    %p102 = scmp.ne.s32.totalorder %s93, %s94
    %p103 = scmp.eq.s32.totalorder %s15, 0
    %p104 = por %p102, %p103
    %p105 = scmp.ne.s32.totalorder %s93, %s94
    %p106 = scmp.eq.s32.totalorder %s16, 1
    %p107 = por %p105, %p106
    %p109 = scmp.ne.s32.totalorder %s94, %s108
    %p110 = scmp.eq.s32.totalorder %s16, 0
    %p111 = por %p109, %p110
    %s112 = ssub.s32 %s10, %s17
    %p113 = scmp.eq.s32.totalorder %s112, 0
    %s115 = sadd.s32 %s114, 1
    %s116 = scalar_select %p113, %s114, %s115
    %p119 = pneg %p113
    %p120 = scmp.eq.s32.totalorder %s10, 1
    %p121 = por %p119, %p120
    %p122 = scmp.ne.s32.totalorder %s114, %s117
    %p123 = scmp.eq.s32.totalorder %s10, 0
    %p124 = por %p122, %p123
    %p125 = scmp.ne.s32.totalorder %s114, %s117
    %p126 = scmp.eq.s32.totalorder %s15, 1
    %p127 = por %p125, %p126
    %p128 = scmp.ne.s32.totalorder %s117, %s118
    %p129 = scmp.eq.s32.totalorder %s15, 0
    %p130 = por %p128, %p129
    %p131 = scmp.ne.s32.totalorder %s117, %s118
    %p132 = scmp.eq.s32.totalorder %s16, 1
    %p133 = por %p131, %p132
    %p135 = scmp.ne.s32.totalorder %s118, %s134
    %p136 = scmp.eq.s32.totalorder %s16, 0
    %p137 = por %p135, %p136
    %p138 = scmp.le.s32.totalorder 1, %s10
    %p139 = scmp.lt.s32.totalorder %s10, 3
    %p140 = pnand %p138, %p139
    %p141 = pneg %p140
    // Predicated region
    $region9: #{resblock_forward.5} parent=5 // pred_check
      _
    $region10: #{resblock_forward.5} parent=5 // pred_check_branch
      %143 = sbr.rel (%p140) target = $region12
    $region11: #{resblock_forward.5} parent=5 // pred_region
      %s144 = ssub.s32 %s10, 1
      // Predicated region
      $region13: #{resblock_forward.5} parent=11 // pred_check
        %p145 = pneg %p83
      $region14: #{resblock_forward.5} parent=11 // pred_check_branch
        %147 = sbr.rel (%p145) target = $region16
      $region15: #{resblock_forward.5} parent=11 // pred_region
        _
      $region16: #{resblock_forward.5} parent=11 // pred_fallthru
        _
      // Predicated region
      $region17: #{resblock_forward.5} parent=11 // pred_check
        %p148 = pneg %p104
      $region18: #{resblock_forward.5} parent=11 // pred_check_branch
        %150 = sbr.rel (%p148) target = $region20
      $region19: #{resblock_forward.5} parent=11 // pred_region
        _
      $region20: #{resblock_forward.5} parent=11 // pred_fallthru
        _
    $region12: #{resblock_forward.5} parent=5 // pred_fallthru
      _
    %p151 = scmp.lt.s32.totalorder %s10, 2
    // Predicated region
    $region21: #{resblock_forward.5} parent=5 // pred_check
      %p152 = pneg %p151
    $region22: #{resblock_forward.5} parent=5 // pred_check_branch
      %154 = sbr.rel (%p152) target = $region24
    $region23: #{resblock_forward.5} parent=5 // pred_region
      // Predicated region
      $region25: #{resblock_forward.5} parent=23 // pred_check
        %p155 = pneg %p30
      $region26: #{resblock_forward.5} parent=23 // pred_check_branch
        %157 = sbr.rel (%p155) target = $region28
      $region27: #{resblock_forward.5} parent=23 // pred_region
        %p158 = scmp.lt.s32.totalorder %s10, 1
        %s159 = scalar_select %p158, %s10, 1
        %s160 = smul.addr %s159, 2
        %s161 = smul.addr %s160, 4
        %s162 = scalar_lea.vmem %s0, %s161
      $region28: #{resblock_forward.5} parent=23 // pred_fallthru
        _
      // Predicated region
      $region29: #{resblock_forward.5} parent=23 // pred_check
        %p163 = pneg %p56
      $region30: #{resblock_forward.5} parent=23 // pred_check_branch
        %165 = sbr.rel (%p163) target = $region32
      $region31: #{resblock_forward.5} parent=23 // pred_region
        %p166 = scmp.lt.s32.totalorder %s10, 1
        %s167 = scalar_select %p166, %s10, 1
        %s168 = smul.addr %s167, 2
        %s169 = smul.addr %s168, 8
        %s170 = scalar_lea.vmem %s1, %s169
      $region32: #{resblock_forward.5} parent=23 // pred_fallthru
        _
    $region24: #{resblock_forward.5} parent=5 // pred_fallthru
      _
    %p171 = scmp.le.s32.totalorder 1, %s10
    %p172 = scmp.lt.s32.totalorder %s10, 3
    %p173 = pnand %p171, %p172
    %p174 = pneg %p173
    // Predicated region
    $region33: #{resblock_forward.5} parent=5 // pred_check
      _
    $region34: #{resblock_forward.5} parent=5 // pred_check_branch
      %176 = sbr.rel (%p173) target = $region36
    $region35: #{resblock_forward.5} parent=5 // pred_region
      %s177 = ssub.s32 %s10, 1
      %p178 = scmp.lt.s32.totalorder %s15, 1
      %s179 = scalar_select %p178, %s15, 1
      %s180 = smul.addr %s179, 2
      %s181 = smul.addr %s180, 4
      %s182 = scalar_lea.vmem %s0, %s181
      %p183 = pneg %p36
      %p184 = pneg %p33
      %p185 = scmp.lt.s32.totalorder %s15, 1
      %s186 = scalar_select %p185, %s15, 1
      %s187 = smul.addr %s186, 2
      %s188 = smul.addr %s187, 8
      %s189 = scalar_lea.vmem %s1, %s188
      %p190 = pneg %p62
      %p191 = pneg %p59
      %p192 = pneg %p83
      %p193 = pneg %p80
      %p194 = pneg %p104
      %p195 = pneg %p101
      %p196 = pneg %p130
      %p197 = pneg %p127
      %p198 = scmp.lt.s32.totalorder %s15, 1
      %s199 = scalar_select %p198, %s15, 1
      %s200 = smul.addr %s199, 2
      %s201 = smul.addr %s200, 8
      %s202 = scalar_lea.vmem %s4, %s201
      %p203 = scmp.lt.s32.totalorder %s15, 1
      %s204 = scalar_select %p203, %s15, 1
      %s205 = smul.addr %s204, 2
      %s206 = smul.addr %s205, 4
      %s207 = scalar_lea.vmem %s0, %s206
      %p208 = scmp.lt.s32.totalorder %s15, 1
      %s209 = scalar_select %p208, %s15, 1
      %s210 = smul.addr %s209, 2
      %s211 = smul.addr %s210, 8
      %s212 = scalar_lea.vmem %s1, %s211
      %p213 = scmp.lt.s32.totalorder %s15, 1
      %s214 = scalar_select %p213, %s15, 1
      %s215 = smul.addr %s214, 2
      %s216 = smul.addr %s215, 8
      %s217 = scalar_lea.vmem %s4, %s216
      %v218 = vld [vmem:[%s207] sm:$0xf]
      %v219 = vld [vmem:[%s207 + $0x4] sm:$0xf]
      %v220 = vunpack.c.l.bf16 %v218
      %v221 = vunpack.c.l.bf16 %v219
      %v222 = vld [vmem:[%s2] sm:$0x1]
      %v224 = vlaneseq
      %v225 = vshrl.u32 %v224, 7
      %v226 = vsub.s32 0, %v225
      %v227 = vrot.slane %v222, %v226
      %v229 = vmul.f32 %v220, %v227
      %v230 = vmul.f32 %v221, %v227
      %v231 = vld [vmem:[%s3] sm:$0x1]
      %v233 = vlaneseq
      %v234 = vshrl.u32 %v233, 7
      %v235 = vsub.s32 0, %v234
      %v236 = vrot.slane %v231, %v235
      %v238 = vadd.f32 %v229, %v236
      %v239 = vadd.f32 %v230, %v236
      %v240 = vld [vmem:[%s212] sm:$0xff]
      %v241 = vld [vmem:[%s212 + $0x8] sm:$0xff]
      %v242 = vadd.f32 %v238, %v240
      %v243 = vadd.f32 %v239, %v241
      %v244 = vmax.f32 %v242, 0.0
      %v245 = vmax.f32 %v243, 0.0
      %vm246 = vcmask 523264
      %247 = vst.msk [vmem:[%s217] sm:$0xff] %vm246, %v244
      %248 = vst.msk [vmem:[%s217 + $0x8] sm:$0xff] %vm246, %v245
      %p249 = scmp.lt.s32.totalorder %s15, 1
      %s250 = scalar_select %p249, %s15, 1
      %s251 = smul.addr %s250, 2
      %s252 = smul.addr %s251, 8
      %s253 = scalar_lea.vmem %s4, %s252
      // Predicated region
      $region37: #{resblock_forward.5} parent=35 // pred_check
        %p254 = pneg %p127
      $region38: #{resblock_forward.5} parent=35 // pred_check_branch
        %256 = sbr.rel (%p254) target = $region40
      $region39: #{resblock_forward.5} parent=35 // pred_region
        _
      $region40: #{resblock_forward.5} parent=35 // pred_fallthru
        _
    $region36: #{resblock_forward.5} parent=5 // pred_fallthru
      _
    %p257 = scmp.le.s32.totalorder 2, %s10
    // Predicated region
    $region41: #{resblock_forward.5} parent=5 // pred_check
      %p258 = pneg %p257
    $region42: #{resblock_forward.5} parent=5 // pred_check_branch
      %260 = sbr.rel (%p258) target = $region44
    $region43: #{resblock_forward.5} parent=5 // pred_region
      %s261 = ssub.s32 %s10, 2
      // Predicated region
      $region45: #{resblock_forward.5} parent=43 // pred_check
        %p262 = pneg %p133
      $region46: #{resblock_forward.5} parent=43 // pred_check_branch
        %264 = sbr.rel (%p262) target = $region48
      $region47: #{resblock_forward.5} parent=43 // pred_region
        %p265 = scmp.lt.s32.totalorder %s16, 1
        %s266 = scalar_select %p265, %s16, 1
        %s267 = smul.addr %s266, 2
        %s268 = smul.addr %s267, 8
        %s269 = scalar_lea.vmem %s4, %s268
      $region48: #{resblock_forward.5} parent=43 // pred_fallthru
        _
    $region44: #{resblock_forward.5} parent=5 // pred_fallthru
      _
  $region6: #{resblock_forward.5} parent=0 // loop_footer
    %s14 = sadd.s32 1, %s10
  $region7: #{resblock_forward.5} parent=0 // loop_footer_branch
    %9 = sbr.rel target = $region3
  $region8: #{resblock_forward.5} parent=0 // loop_exit
    _

</llo_original>
